<compile_context>
chip_gen: v7x
topology: tpu7x:2x2x1
jax: 0.10.0
libtpu: 0.0.40
codegen_flags: <defaults>
</compile_context>

<pallas_src>
import jax
import jax.numpy as jnp
from jax import lax
from jax.experimental import pallas as pl
from jax.experimental.pallas import tpu as pltpu

BN_EPS = 1e-5


# ---------------------------------------------------------------------------
# Pallas kernels
# ---------------------------------------------------------------------------
def conv_max_kernel(x_ref, w1_ref, b1_ref, w2_ref, b2_ref, w3_ref, b3_ref,
                    g_ref, acc_ref):
    """One (k, TN) tile of points (native NCW layout): conv1-3 (1x1 conv =
    matmul) + ReLU, with a running channel-wise max kept in an (8, C3) VMEM
    scratch; the final 8->1 reduce + store happen only on the last N-tile."""
    n = pl.program_id(2)

    @pl.when(n == 0)
    def _():
        # ReLU output is >= 0, so 0 is a valid identity for the running max.
        acc_ref[...] = jnp.zeros_like(acc_ref)

    x = x_ref[0].astype(jnp.bfloat16)                              # (k, TN)
    # conv1: contract over channels (leading axis of x) -> (TN, 64)
    h = lax.dot_general(x, w1_ref[...], (((0,), (0,)), ((), ())),
                        preferred_element_type=jnp.float32) + b1_ref[...]
    h = jnp.maximum(h, 0.0).astype(jnp.bfloat16)                   # (TN, 64)
    h = jnp.dot(h, w2_ref[...], preferred_element_type=jnp.float32) + b2_ref[...]
    h = jnp.maximum(h, 0.0).astype(jnp.bfloat16)                   # (TN, 128)
    h = jnp.dot(h, w3_ref[...], preferred_element_type=jnp.float32) + b3_ref[...]
    h = jnp.maximum(h, 0.0)                                        # (TN, 1024) f32

    t, c = h.shape
    # Per-step max over 8-row groups is elementwise across vregs (VALU only);
    # the cross-sublane reduce is deferred to the epilogue below.
    acc_ref[...] = jnp.maximum(acc_ref[...],
                               jnp.max(h.reshape(t // 8, 8, c), axis=0))

    @pl.when(n == pl.num_programs(2) - 1)
    def _():
        g_ref[0, 0] = jnp.max(acc_ref[...], axis=0, keepdims=True)


def fc_head_kernel(g_ref, f1_ref, c1_ref, f2_ref, c2_ref, f3_ref, c3_ref,
                   eye_ref, out_ref):
    """Batched FC head: (B, 1024) -> fc1 -> fc2 -> fc3 -> + identity -> (B, k*k)."""
    g = g_ref[...].astype(jnp.bfloat16)                            # (B, 1024)
    h = jnp.dot(g, f1_ref[...], preferred_element_type=jnp.float32) + c1_ref[...]
    h = jnp.maximum(h, 0.0).astype(jnp.bfloat16)                   # (B, 512)
    h = jnp.dot(h, f2_ref[...], preferred_element_type=jnp.float32) + c2_ref[...]
    h = jnp.maximum(h, 0.0).astype(jnp.bfloat16)                   # (B, 256)
    out_ref[...] = (jnp.dot(h, f3_ref[...], preferred_element_type=jnp.float32)
                    + c3_ref[...] + eye_ref[...])                  # (B, k*k) f32


# ---------------------------------------------------------------------------
# Glue: generation-aware tile selection
# ---------------------------------------------------------------------------
def _vmem_limit_bytes():
    try:
        kind = jax.devices()[0].device_kind.lower()
    except Exception:
        kind = ""
    if "v7" in kind:
        return 48 * 1024 * 1024        # v7x: 64 MiB physical VMEM per TC
    return 64 * 1024 * 1024            # v5e/v6e: 128 MiB physical VMEM


def _auto_tile(n, budget_bytes, k, c1, c2, c3):
    """Largest point tile whose per-step live footprint fits the VMEM budget."""
    def step_bytes(t):
        return (2 * k * t * 4                       # double-buffered (k,t) f32 input
                + t * c3 * 4                        # conv3 activations (f32)
                + t * c2 * 2 + t * c1 * 4           # intermediates
                + 8 * c3 * 4                        # running-max scratch
                + 2 * 2 * (k * c1 + c1 * c2 + c2 * c3)  # bf16 weights, dbl-buffered
                + 2 * 1024 * 1024)                  # slack
    cands = (2048, 1024, 512, 256, 128)
    fitting = [c for c in cands if step_bytes(c) <= budget_bytes]
    tn_max = fitting[0] if fitting else 128
    if n <= tn_max:
        return max(8, -(-n // 8) * 8)               # single full-N tile, 8-aligned
    exact = [c for c in fitting if n % c == 0]
    if exact:
        return exact[0]
    # N not divisible by any candidate: minimize padding waste, prefer big tiles.
    return min(fitting, key=lambda c: ((-(-n // c)) * c - n, -c))


# ---------------------------------------------------------------------------
# Wrapper
# ---------------------------------------------------------------------------
def tnetkd_forward(x_bkn, params, *, tn=None, n_splits=None):
    """TNetkd forward (eval-mode BN folded).  x_bkn: (B, k, N) float32 (NCW)."""
    B, k, N = x_bkn.shape
    W1, b1, W2, b2, W3, b3, F1, c1, F2, c2, F3, c3 = params
    C1, C2, C3 = W1.shape[1], W2.shape[1], W3.shape[1]

    vmem_limit = _vmem_limit_bytes()
    if tn is None:
        tn = _auto_tile(N, vmem_limit // 2, k, C1, C2, C3)
    n_pad = -(-N // tn) * tn
    assert tn % 8 == 0 and (tn == n_pad or tn % 128 == 0), (tn, n_pad)

    x = x_bkn
    if n_pad != N:
        # Duplicate the last real point: cannot change the max after ReLU.
        x = jnp.pad(x, ((0, 0), (0, 0), (0, n_pad - N)), mode="edge")

    nt = n_pad // tn
    if n_splits is None:
        # Give small-batch inference a 2-way parallel axis (v7x dual TC).
        n_splits = 2 if (B == 1 and nt >= 2 and nt % 2 == 0) else 1
    if nt % n_splits != 0:
        n_splits = 1
    nt_per = nt // n_splits

    conv_p = [W1.astype(jnp.bfloat16), b1,
              W2.astype(jnp.bfloat16), b2,
              W3.astype(jnp.bfloat16), b3]

    conv_flops = 2 * B * n_pad * (k * C1 + C1 * C2 + C2 * C3)
    conv_bytes = (B * n_pad * k * 4
                  + (k * C1 + C1 * C2 + C2 * C3) * 2
                  + (C1 + C2 + C3) * 4
                  + n_splits * B * C3 * 4)

    # ---- conv1-3 + ReLU + max over points, tiled over N ---------------------
    pooled = pl.pallas_call(
        conv_max_kernel,
        out_shape=jax.ShapeDtypeStruct((n_splits, B, 1, C3), jnp.float32),
        grid=(n_splits, B, nt_per),
        in_specs=[pl.BlockSpec((1, k, tn),
                               lambda s, b, n: (b, 0, s * nt_per + n))]
                 + [pl.BlockSpec(p.shape, lambda s, b, n, _nd=p.ndim: (0,) * _nd)
                    for p in conv_p],
        out_specs=pl.BlockSpec((1, 1, 1, C3), lambda s, b, n: (s, b, 0, 0)),
        scratch_shapes=[pltpu.VMEM((8, C3), jnp.float32)],
        compiler_params=pltpu.CompilerParams(
            dimension_semantics=("parallel", "parallel", "arbitrary"),
            vmem_limit_bytes=vmem_limit),
        cost_estimate=pl.CostEstimate(flops=conv_flops, transcendentals=0,
                                      bytes_accessed=conv_bytes),
    )(x, *conv_p)

    # Merge split partial maxes (trivial squeeze when n_splits == 1).
    g = jnp.max(pooled, axis=0).reshape(B, C3)

    # ---- batched FC head (M = B), lane-dense (B, k*k) output ----------------
    eye = jnp.eye(k, dtype=jnp.float32).reshape(1, k * k)
    fc_flops = 2 * B * (C3 * F1.shape[1] + F1.shape[1] * F2.shape[1]
                        + F2.shape[1] * k * k)
    fc_bytes = (B * C3 * 4
                + (C3 * F1.shape[1] + F1.shape[1] * F2.shape[1]
                   + F2.shape[1] * k * k) * 2
                + B * k * k * 4)
    t = pl.pallas_call(
        fc_head_kernel,
        out_shape=jax.ShapeDtypeStruct((B, k * k), jnp.float32),
        cost_estimate=pl.CostEstimate(flops=fc_flops, transcendentals=0,
                                      bytes_accessed=fc_bytes),
    )(g, F1.astype(jnp.bfloat16), c1, F2.astype(jnp.bfloat16), c2,
      F3.astype(jnp.bfloat16), c3, eye)

    return t.reshape(B, k, k)


# ---------------------------------------------------------------------------
# Deterministic parameter init (synthetic; BN folded into weights, eval mode)
# ---------------------------------------------------------------------------
def make_params(key, k=64):
    keys = iter(jax.random.split(key, 16))

    def lin(fan_in, fan_out, scale=0.05):
        k1, k2 = jax.random.split(next(keys))
        W = scale * jax.random.normal(k1, (fan_in, fan_out), jnp.float32)
        b = 0.1 * jax.random.normal(k2, (fan_out,), jnp.float32)
        return W, b

    def bn(c):
        k1, k2 = jax.random.split(next(keys))
        gamma = 1.0 + 0.1 * jax.random.normal(k1, (c,), jnp.float32)
        beta = 0.1 * jax.random.normal(k2, (c,), jnp.float32)
        mean = jnp.zeros((c,), jnp.float32)     # PyTorch default running stats
        var = jnp.ones((c,), jnp.float32)
        return gamma, beta, mean, var

    def fold(Wb, bn_p):
        W, b = Wb
        gamma, beta, mean, var = bn_p
        s = gamma / jnp.sqrt(var + BN_EPS)
        return W * s[None, :], ((b - mean) * s + beta).reshape(1, -1)

    W1, b1 = fold(lin(k, 64), bn(64))          # conv1 + bn1
    W2, b2 = fold(lin(64, 128), bn(128))       # conv2 + bn2
    W3, b3 = fold(lin(128, 1024), bn(1024))    # conv3 + bn3
    F1, c1 = fold(lin(1024, 512), bn(512))     # fc1 + bn4
    F2, c2 = fold(lin(512, 256), bn(256))      # fc2 + bn5
    F3, c3r = lin(256, k * k)                  # fc3 (no BN)
    c3 = c3r.reshape(1, -1)
    return [W1, b1, W2, b2, W3, b3, F1, c1, F2, c2, F3, c3]


# ---------------------------------------------------------------------------
# Pure-JAX (f32) reference for correctness checking
# ---------------------------------------------------------------------------
def reference(x_bkn, params):
    B, k, N = x_bkn.shape
    W1, b1, W2, b2, W3, b3, F1, c1, F2, c2, F3, c3 = params
    x = jnp.transpose(x_bkn, (0, 2, 1))                 # (B, N, k)
    h = jnp.maximum(jnp.einsum("bnc,cd->bnd", x, W1) + b1, 0.0)
    h = jnp.maximum(jnp.einsum("bnc,cd->bnd", h, W2) + b2, 0.0)
    h = jnp.maximum(jnp.einsum("bnc,cd->bnd", h, W3) + b3, 0.0)
    g = jnp.max(h, axis=1)                              # (B, 1024)
    g = jnp.maximum(g @ F1 + c1, 0.0)
    g = jnp.maximum(g @ F2 + c2, 0.0)
    t = g @ F3 + c3 + jnp.eye(k, dtype=jnp.float32).reshape(1, k * k)
    return t.reshape(B, k, k)


if __name__ == "__main__":
    key = jax.random.PRNGKey(0)
    kx, kp = jax.random.split(key)
    K_CH = 64
    params = make_params(kp, k=K_CH)

    # Case 1: B=2, N=300 — exercises edge-padding + running max across N tiles.
    x1 = jax.random.normal(jax.random.fold_in(kx, 1), (2, K_CH, 300), jnp.float32)
    out1 = tnetkd_forward(x1, params, tn=128)
    jax.block_until_ready(out1)
    ref1 = reference(x1, params)
    assert out1.shape == (2, K_CH, K_CH)
    assert bool(jnp.all(jnp.isfinite(out1)))
    err1 = float(jnp.max(jnp.abs(out1 - ref1)))
    assert jnp.allclose(out1, ref1, rtol=2e-2, atol=2e-2), err1

    # Case 2: B=1, N=256 — exercises the 2-way N-split parallel axis (v7x dual TC).
    x2 = jax.random.normal(jax.random.fold_in(kx, 2), (1, K_CH, 256), jnp.float32)
    out2 = tnetkd_forward(x2, params, tn=128)
    jax.block_until_ready(out2)
    ref2 = reference(x2, params)
    assert out2.shape == (1, K_CH, K_CH)
    err2 = float(jnp.max(jnp.abs(out2 - ref2)))
    assert jnp.allclose(out2, ref2, rtol=2e-2, atol=2e-2), err2

    print("KERNEL_OK")
</pallas_src>

<mosaic_0001>
module attributes {stable_mosaic.version = 11 : i64} {
  func.func @conv_max_kernel(%arg0: i32, %arg1: i32, %arg2: i32, %arg3: memref<1x64x128xf32, #tpu.memory_space<vmem>>, %arg4: memref<64x64xbf16, #tpu.memory_space<vmem>>, %arg5: memref<1x64xf32, #tpu.memory_space<vmem>>, %arg6: memref<64x128xbf16, #tpu.memory_space<vmem>>, %arg7: memref<1x128xf32, #tpu.memory_space<vmem>>, %arg8: memref<128x1024xbf16, #tpu.memory_space<vmem>>, %arg9: memref<1x1024xf32, #tpu.memory_space<vmem>>, %arg10: memref<1x1x1x1024xf32, #tpu.memory_space<vmem>>, %arg11: memref<8x1024xf32, #tpu.memory_space<vmem>>) attributes {dimension_semantics = [#tpu.dimension_semantics<parallel>, #tpu.dimension_semantics<parallel>, #tpu.dimension_semantics<arbitrary>], iteration_bounds = array<i64: 1, 2, 3>, scalar_prefetch = 0 : i64, scratch_operands = 1 : i64, tpu.core_type = #tpu.core_type<tc>, window_params = [{transform_indices = @transform_0, window_bounds = array<i64: 1, 64, 128>}, {pipeline_mode = #tpu.pipeline_mode<synchronous>, transform_indices = @transform_1, window_bounds = array<i64: 64, 64>}, {pipeline_mode = #tpu.pipeline_mode<synchronous>, transform_indices = @transform_2, window_bounds = array<i64: 1, 64>}, {pipeline_mode = #tpu.pipeline_mode<synchronous>, transform_indices = @transform_3, window_bounds = array<i64: 64, 128>}, {pipeline_mode = #tpu.pipeline_mode<synchronous>, transform_indices = @transform_4, window_bounds = array<i64: 1, 128>}, {pipeline_mode = #tpu.pipeline_mode<synchronous>, transform_indices = @transform_5, window_bounds = array<i64: 128, 1024>}, {pipeline_mode = #tpu.pipeline_mode<synchronous>, transform_indices = @transform_6, window_bounds = array<i64: 1, 1024>}, {transform_indices = @transform_7, window_bounds = array<i64: 1, 1, 1, 1024>}]} {
    %c0_i32 = arith.constant 0 : i32
    %0 = arith.cmpi eq, %arg2, %c0_i32 : i32
    %1 = arith.extui %0 : i1 to i32
    %c0_i32_0 = arith.constant 0 : i32
    %2 = arith.cmpi ne, %1, %c0_i32_0 : i32
    scf.if %2 {
      %cst_26 = arith.constant 0.000000e+00 : f32
      %37 = vector.broadcast %cst_26 : f32 to vector<8x1024xf32>
      %c0_27 = arith.constant 0 : index
      %c0_28 = arith.constant 0 : index
      %38 = vector.load %arg11[%c0_27, %c0_28] : memref<8x1024xf32, #tpu.memory_space<vmem>>, vector<8x1024xf32>
      tpu.vector_store %arg11[%c0_27, %c0_28], %37 {strides = array<i32>} : memref<8x1024xf32, #tpu.memory_space<vmem>>, vector<8x1024xf32>,
    } else {
    }
    %c0 = arith.constant 0 : index
    %c0_1 = arith.constant 0 : index
    %c0_2 = arith.constant 0 : index
    %3 = vector.load %arg3[%c0, %c0_1, %c0_2] : memref<1x64x128xf32, #tpu.memory_space<vmem>>, vector<1x64x128xf32>
    %4 = vector.shape_cast %3 : vector<1x64x128xf32> to vector<64x128xf32>
    %5 = arith.truncf %4 : vector<64x128xf32> to vector<64x128xbf16>
    %c0_3 = arith.constant 0 : index
    %c0_4 = arith.constant 0 : index
    %6 = vector.load %arg4[%c0_3, %c0_4] : memref<64x64xbf16, #tpu.memory_space<vmem>>, vector<64x64xbf16>
    %cst = arith.constant dense<0.000000e+00> : vector<128x64xf32>
    %7 = tpu.matmul %5, %6, %cst {dimension_numbers = #tpu.dot_dimension_numbers<[0], [0], [1], [1], [0, 1, 1, 1], [], []>} : vector<64x128xbf16>, vector<64x64xbf16>, vector<128x64xf32> -> vector<128x64xf32>
    %c0_5 = arith.constant 0 : index
    %c0_6 = arith.constant 0 : index
    %8 = vector.load %arg5[%c0_5, %c0_6] : memref<1x64xf32, #tpu.memory_space<vmem>>, vector<1x64xf32>
    %9 = vector.broadcast %8 : vector<1x64xf32> to vector<128x64xf32>
    %10 = arith.addf %7, %9 : vector<128x64xf32>
    %cst_7 = arith.constant 0.000000e+00 : f32
    %11 = vector.broadcast %cst_7 : f32 to vector<128x64xf32>
    %12 = arith.maximumf %10, %11 : vector<128x64xf32>
    %13 = arith.truncf %12 : vector<128x64xf32> to vector<128x64xbf16>
    %c0_8 = arith.constant 0 : index
    %c0_9 = arith.constant 0 : index
    %14 = vector.load %arg6[%c0_8, %c0_9] : memref<64x128xbf16, #tpu.memory_space<vmem>>, vector<64x128xbf16>
    %cst_10 = arith.constant dense<0.000000e+00> : vector<128x128xf32>
    %15 = tpu.matmul %13, %14, %cst_10 {dimension_numbers = #tpu.dot_dimension_numbers<[1], [0], [0], [1], [0, 0, 1, 1], [], []>} : vector<128x64xbf16>, vector<64x128xbf16>, vector<128x128xf32> -> vector<128x128xf32>
    %c0_11 = arith.constant 0 : index
    %c0_12 = arith.constant 0 : index
    %16 = vector.load %arg7[%c0_11, %c0_12] : memref<1x128xf32, #tpu.memory_space<vmem>>, vector<1x128xf32>
    %17 = vector.broadcast %16 : vector<1x128xf32> to vector<128x128xf32>
    %18 = arith.addf %15, %17 : vector<128x128xf32>
    %cst_13 = arith.constant 0.000000e+00 : f32
    %19 = vector.broadcast %cst_13 : f32 to vector<128x128xf32>
    %20 = arith.maximumf %18, %19 : vector<128x128xf32>
    %21 = arith.truncf %20 : vector<128x128xf32> to vector<128x128xbf16>
    %c0_14 = arith.constant 0 : index
    %c0_15 = arith.constant 0 : index
    %22 = vector.load %arg8[%c0_14, %c0_15] : memref<128x1024xbf16, #tpu.memory_space<vmem>>, vector<128x1024xbf16>
    %cst_16 = arith.constant dense<0.000000e+00> : vector<128x1024xf32>
    %23 = tpu.matmul %21, %22, %cst_16 {dimension_numbers = #tpu.dot_dimension_numbers<[1], [0], [0], [1], [0, 0, 1, 1], [], []>} : vector<128x128xbf16>, vector<128x1024xbf16>, vector<128x1024xf32> -> vector<128x1024xf32>
    %c0_17 = arith.constant 0 : index
    %c0_18 = arith.constant 0 : index
    %24 = vector.load %arg9[%c0_17, %c0_18] : memref<1x1024xf32, #tpu.memory_space<vmem>>, vector<1x1024xf32>
    %25 = vector.broadcast %24 : vector<1x1024xf32> to vector<128x1024xf32>
    %26 = arith.addf %23, %25 : vector<128x1024xf32>
    %cst_19 = arith.constant 0.000000e+00 : f32
    %27 = vector.broadcast %cst_19 : f32 to vector<128x1024xf32>
    %28 = arith.maximumf %26, %27 : vector<128x1024xf32>
    %c0_20 = arith.constant 0 : index
    %c0_21 = arith.constant 0 : index
    %29 = vector.load %arg11[%c0_20, %c0_21] : memref<8x1024xf32, #tpu.memory_space<vmem>>, vector<8x1024xf32>
    %30 = vector.shape_cast %28 : vector<128x1024xf32> to vector<16x8x1024xf32>
    %cst_22 = arith.constant dense<0xFF800000> : vector<8x1024xf32>
    %31 = vector.multi_reduction <maximumf>, %30, %cst_22 [0] : vector<16x8x1024xf32> to vector<8x1024xf32>
    %32 = arith.maximumf %29, %31 : vector<8x1024xf32>
    %c0_23 = arith.constant 0 : index
    %c0_24 = arith.constant 0 : index
    %33 = vector.load %arg11[%c0_23, %c0_24] : memref<8x1024xf32, #tpu.memory_space<vmem>>, vector<8x1024xf32>
    tpu.vector_store %arg11[%c0_23, %c0_24], %32 {strides = array<i32>} : memref<8x1024xf32, #tpu.memory_space<vmem>>, vector<8x1024xf32>,
    %c2_i32 = arith.constant 2 : i32
    %34 = arith.cmpi eq, %arg2, %c2_i32 : i32
    %35 = arith.extui %34 : i1 to i32
    %c0_i32_25 = arith.constant 0 : i32
    %36 = arith.cmpi ne, %35, %c0_i32_25 : i32
    scf.if %36 {
      %c0_26 = arith.constant 0 : index
      %c0_27 = arith.constant 0 : index
      %37 = vector.load %arg11[%c0_26, %c0_27] : memref<8x1024xf32, #tpu.memory_space<vmem>>, vector<8x1024xf32>
      %cst_28 = arith.constant dense<0xFF800000> : vector<1024xf32>
      %38 = vector.multi_reduction <maximumf>, %37, %cst_28 [0] : vector<8x1024xf32> to vector<1024xf32>
      %39 = vector.shape_cast %38 : vector<1024xf32> to vector<1x1024xf32>
      %c0_29 = arith.constant 0 : index
      %c0_30 = arith.constant 0 : index
      %c0_31 = arith.constant 0 : index
      %c0_32 = arith.constant 0 : index
      %40 = vector.load %arg10[%c0_29, %c0_30, %c0_31, %c0_32] : memref<1x1x1x1024xf32, #tpu.memory_space<vmem>>, vector<1x1x1x1024xf32>
      %41 = vector.shape_cast %40 : vector<1x1x1x1024xf32> to vector<1x1024xf32>
      %42 = vector.shape_cast %39 : vector<1x1024xf32> to vector<1x1x1x1024xf32>
      tpu.vector_store %arg10[%c0_29, %c0_30, %c0_31, %c0_32], %42 {strides = array<i32>} : memref<1x1x1x1024xf32, #tpu.memory_space<vmem>>, vector<1x1x1x1024xf32>,
    } else {
    }
    return
  }
  func.func @transform_0(%arg0: i32, %arg1: i32, %arg2: i32) -> (i32, i32, i32) {
    %c3_i32 = arith.constant 3 : i32
    %0 = arith.muli %arg0, %c3_i32 : i32
    %1 = arith.addi %0, %arg2 : i32
    %c0_i32 = arith.constant 0 : i32
    %c0_i32_0 = arith.constant 0 : i32
    return %arg1, %c0_i32, %1 : i32, i32, i32
  }
  func.func @transform_1(%arg0: i32, %arg1: i32, %arg2: i32) -> (i32, i32) {
    %c0_i32 = arith.constant 0 : i32
    %c0_i32_0 = arith.constant 0 : i32
    %c0_i32_1 = arith.constant 0 : i32
    return %c0_i32, %c0_i32_0 : i32, i32
  }
  func.func @transform_2(%arg0: i32, %arg1: i32, %arg2: i32) -> (i32, i32) {
    %c0_i32 = arith.constant 0 : i32
    %c0_i32_0 = arith.constant 0 : i32
    %c0_i32_1 = arith.constant 0 : i32
    return %c0_i32, %c0_i32_0 : i32, i32
  }
  func.func @transform_3(%arg0: i32, %arg1: i32, %arg2: i32) -> (i32, i32) {
    %c0_i32 = arith.constant 0 : i32
    %c0_i32_0 = arith.constant 0 : i32
    %c0_i32_1 = arith.constant 0 : i32
    return %c0_i32, %c0_i32_0 : i32, i32
  }
  func.func @transform_4(%arg0: i32, %arg1: i32, %arg2: i32) -> (i32, i32) {
    %c0_i32 = arith.constant 0 : i32
    %c0_i32_0 = arith.constant 0 : i32
    %c0_i32_1 = arith.constant 0 : i32
    return %c0_i32, %c0_i32_0 : i32, i32
  }
  func.func @transform_5(%arg0: i32, %arg1: i32, %arg2: i32) -> (i32, i32) {
    %c0_i32 = arith.constant 0 : i32
    %c0_i32_0 = arith.constant 0 : i32
    %c0_i32_1 = arith.constant 0 : i32
    return %c0_i32, %c0_i32_0 : i32, i32
  }
  func.func @transform_6(%arg0: i32, %arg1: i32, %arg2: i32) -> (i32, i32) {
    %c0_i32 = arith.constant 0 : i32
    %c0_i32_0 = arith.constant 0 : i32
    %c0_i32_1 = arith.constant 0 : i32
    return %c0_i32, %c0_i32_0 : i32, i32
  }
  func.func @transform_7(%arg0: i32, %arg1: i32, %arg2: i32) -> (i32, i32, i32, i32) {
    %c0_i32 = arith.constant 0 : i32
    %c0_i32_0 = arith.constant 0 : i32
    %c0_i32_1 = arith.constant 0 : i32
    return %arg0, %arg1, %c0_i32, %c0_i32_0 : i32, i32, i32, i32
  }
}

</mosaic_0001>

<llo_original>
// kernel: tpu_custom_call.1
$region0: #{tpu_custom_call.1}
  #allocation0 [shape = 'u32[]', space=smem, size = 0x4, offset = 0x4, fixed_abs, tag = 'smem constant byte address 0x4 - core index']
  #allocation1 [shape = 'u32[144,128]{1,0:T(1,128)}', space=vmem, size = 0x12000, scoped, tag = 'internal scratch']
  #allocation2 [shape = 'f32[8,1024]{1,0:T(8,128)}', space=vmem, size = 0x8000, scoped, tag = 'scratch operand']
  %s0 = inlined_call_operand.hbm [shape: f32[2,64,384], index: 0, kind: input, shape index: {}]
  %s1 = inlined_call_operand.hbm [shape: bf16[64,64], index: 1, kind: input, shape index: {}]
  %s2 = inlined_call_operand.hbm [shape: f32[1,64], index: 2, kind: input, shape index: {}]
  %s3 = inlined_call_operand.hbm [shape: bf16[64,128], index: 3, kind: input, shape index: {}]
  %s4 = inlined_call_operand.hbm [shape: f32[1,128], index: 4, kind: input, shape index: {}]
  %s5 = inlined_call_operand.hbm [shape: bf16[128,1024], index: 5, kind: input, shape index: {}]
  %s6 = inlined_call_operand.hbm [shape: f32[1,1024], index: 6, kind: input, shape index: {}]
  %s7 = inlined_call_operand.hbm [shape: f32[1,2,1,1024], index: 7, kind: output, shape index: {}]
  %s8 = sld [smem:[#allocation0]]
  $region97: #{tpu_custom_call.1} parent=0
    _
  %s10 = ssub.s32 1, %s8
  %s11 = scalar_select 0, %s10, %s8
  $region1: #{tpu_custom_call.1} parent=0
    #allocation3 [shape = 'u8[65536]{0}', space=vmem, size = 0x10000, scoped, tag = 'input window, operand 0']
    #allocation4 [shape = 's32[2]{0}', space=sflag, size = 0x8, scoped, tag = 'scoped memory for tpu_custom_call.1']
    #allocation5 [shape = 's32[2]{0}', space=sflag, size = 0x8, scoped, tag = 'scoped memory for tpu_custom_call.1']
    #allocation6 [shape = 'u8[16384]{0}', space=vmem, size = 0x4000, scoped, tag = 'input window, operand 1, single buffered']
    #allocation7 [shape = 's32[1]{0}', space=sflag, size = 0x4, scoped, tag = 'scoped memory for tpu_custom_call.1']
    #allocation8 [shape = 'u8[512]{0}', space=vmem, size = 0x400, scoped, tag = 'input window, operand 2, single buffered']
    #allocation9 [shape = 'u8[16384]{0}', space=vmem, size = 0x4000, scoped, tag = 'input window, operand 3, single buffered']
    #allocation10 [shape = 's32[1]{0}', space=sflag, size = 0x4, scoped, tag = 'scoped memory for tpu_custom_call.1']
    #allocation11 [shape = 'u8[512]{0}', space=vmem, size = 0x400, scoped, tag = 'input window, operand 4, single buffered']
    #allocation12 [shape = 'u8[262144]{0}', space=vmem, size = 0x40000, scoped, tag = 'input window, operand 5, single buffered']
    #allocation13 [shape = 's32[1]{0}', space=sflag, size = 0x4, scoped, tag = 'scoped memory for tpu_custom_call.1']
    #allocation14 [shape = 'u8[4096]{0}', space=vmem, size = 0x1000, scoped, tag = 'input window, operand 6, single buffered']
    #allocation15 [shape = 'u8[8192]{0}', space=vmem, size = 0x2000, scoped, tag = 'output window, operand 0']
    %12 = vsyncpa [#allocation4], 0
    %s13 = scalar_lea.sflag [#allocation4], 1
    %14 = vsyncpa %s13, 0
    %15 = vsyncpa [#allocation7], 0
    %16 = vsyncpa [#allocation10], 0
    %17 = vsyncpa [#allocation13], 0
    %18 = vsyncpa [#allocation5], 0
    %s19 = scalar_lea.sflag [#allocation5], 1
    %20 = vsyncpa %s19, 0
    loop: start=0, step=1, limit=8
    $region2: #{tpu_custom_call.1} parent=1 // loop_pre_header
      _
    $region3: #{tpu_custom_call.1} parent=1 // loop_header
      %s22 = sphi 0, %s26
      %p23 = scmp.ge.s32.totalorder %s22, 8
      %s29 = sphi 0, %s48
      %s30 = sphi 0, %s44
      %s31 = sphi 0, %s40
      %s32 = sphi 0, %s29
      %s33 = sphi 0, %s30
      %s34 = sphi 0, %s31
      %s35 = sphi 0, %s32
      %s36 = sphi 0, %s33
      %s37 = sphi 0, %s34
      %s57 = sphi 0, %s59
      %s60 = sphi 0, %s57
      %s61 = sphi 0, %s60
      %s77 = sphi 0, %s61
      %s81 = sphi 0, %s81
      %s83 = sphi 0, %s81
      %s84 = sphi 0, %s83
      %s98 = sphi 0, %s84
      %s102 = sphi 0, %s102
      %s104 = sphi 0, %s102
      %s105 = sphi 0, %s104
      %s119 = sphi 0, %s105
      %s123 = sphi 0, %s123
      %s125 = sphi 0, %s123
      %s126 = sphi 0, %s125
      %s140 = sphi 0, %s126
      %s144 = sphi 0, %s144
      %s146 = sphi 0, %s144
      %s147 = sphi 0, %s146
      %s161 = sphi 0, %s147
      %s165 = sphi 0, %s165
      %s167 = sphi 0, %s165
      %s168 = sphi 0, %s167
      %s182 = sphi 0, %s168
      %s186 = sphi 0, %s186
      %s188 = sphi 0, %s186
      %s189 = sphi 0, %s188
      %s203 = sphi 0, %s189
      %s211 = sphi 0, %s213
      %s214 = sphi 0, %s211
      %s215 = sphi 0, %s214
      %s231 = sphi 0, %s215
    $region4: #{tpu_custom_call.1} parent=1 // loop_header_branch
      %25 = sbr.rel (%p23) target = $region8
    $region5: #{tpu_custom_call.1} parent=1 // loop_body
      %s27 = ssub.s32 %s22, 1
      %s28 = ssub.s32 %s22, 2
      %s38 = sadd.s32 1, %s31
      %p39 = scmp.ge.s32.totalorder %s38, 3
      %s40 = scalar_select %p39, 0, %s38
      %s41 = sadd.s32 1, %s30
      %s42 = scalar_select %p39, %s41, %s30
      %p43 = scmp.ge.s32.totalorder %s42, 2
      %s44 = scalar_select %p43, 0, %s42
      %s45 = sadd.s32 1, %s29
      %s46 = scalar_select %p43, %s45, %s29
      %p47 = scmp.ge.s32.totalorder %s46, 1
      %s48 = scalar_select %p47, 0, %s46
      %s49 = smul.u32 %s29, 3
      %s50 = sadd.s32 %s49, %s31
      %s51 = smul.u32 %s48, 3
      %s52 = sadd.s32 %s51, %s40
      %s53 = ssub.s32 %s30, %s44
      %s54 = ssub.s32 %s50, %s52
      %s55 = sor.u32 %s53, %s54
      %p56 = scmp.eq.s32.totalorder %s55, 0
      %s58 = sadd.s32 %s57, 1
      %s59 = scalar_select %p56, %s57, %s58
      %p62 = pneg %p56
      %p63 = scmp.eq.s32.totalorder %s22, 5
      %p64 = por %p62, %p63
      %p65 = scmp.ne.s32.totalorder %s57, %s60
      %p66 = scmp.eq.s32.totalorder %s22, 0
      %p67 = por %p65, %p66
      %p68 = scmp.ne.s32.totalorder %s57, %s60
      %p69 = scmp.eq.s32.totalorder %s27, 5
      %p70 = por %p68, %p69
      %p71 = scmp.ne.s32.totalorder %s60, %s61
      %p72 = scmp.eq.s32.totalorder %s27, 0
      %p73 = por %p71, %p72
      %p74 = scmp.ne.s32.totalorder %s60, %s61
      %p75 = scmp.eq.s32.totalorder %s28, 5
      %p76 = por %p74, %p75
      %p78 = scmp.ne.s32.totalorder %s61, %s77
      %p79 = scmp.eq.s32.totalorder %s28, 0
      %p80 = por %p78, %p79
      %s82 = sadd.s32 %s81, 1
      %p85 = scmp.eq.s32.totalorder %s22, 5
      %p86 = scmp.ne.s32.totalorder %s81, %s83
      %p87 = scmp.eq.s32.totalorder %s22, 0
      %p88 = por %p86, %p87
      %p89 = scmp.ne.s32.totalorder %s81, %s83
      %p90 = scmp.eq.s32.totalorder %s27, 5
      %p91 = por %p89, %p90
      %p92 = scmp.ne.s32.totalorder %s83, %s84
      %p93 = scmp.eq.s32.totalorder %s27, 0
      %p94 = por %p92, %p93
      %p95 = scmp.ne.s32.totalorder %s83, %s84
      %p96 = scmp.eq.s32.totalorder %s28, 5
      %p97 = por %p95, %p96
      %p99 = scmp.ne.s32.totalorder %s84, %s98
      %p100 = scmp.eq.s32.totalorder %s28, 0
      %p101 = por %p99, %p100
      %s103 = sadd.s32 %s102, 1
      %p106 = scmp.eq.s32.totalorder %s22, 5
      %p107 = scmp.ne.s32.totalorder %s102, %s104
      %p108 = scmp.eq.s32.totalorder %s22, 0
      %p109 = por %p107, %p108
      %p110 = scmp.ne.s32.totalorder %s102, %s104
      %p111 = scmp.eq.s32.totalorder %s27, 5
      %p112 = por %p110, %p111
      %p113 = scmp.ne.s32.totalorder %s104, %s105
      %p114 = scmp.eq.s32.totalorder %s27, 0
      %p115 = por %p113, %p114
      %p116 = scmp.ne.s32.totalorder %s104, %s105
      %p117 = scmp.eq.s32.totalorder %s28, 5
      %p118 = por %p116, %p117
      %p120 = scmp.ne.s32.totalorder %s105, %s119
      %p121 = scmp.eq.s32.totalorder %s28, 0
      %p122 = por %p120, %p121
      %s124 = sadd.s32 %s123, 1
      %p127 = scmp.eq.s32.totalorder %s22, 5
      %p128 = scmp.ne.s32.totalorder %s123, %s125
      %p129 = scmp.eq.s32.totalorder %s22, 0
      %p130 = por %p128, %p129
      %p131 = scmp.ne.s32.totalorder %s123, %s125
      %p132 = scmp.eq.s32.totalorder %s27, 5
      %p133 = por %p131, %p132
      %p134 = scmp.ne.s32.totalorder %s125, %s126
      %p135 = scmp.eq.s32.totalorder %s27, 0
      %p136 = por %p134, %p135
      %p137 = scmp.ne.s32.totalorder %s125, %s126
      %p138 = scmp.eq.s32.totalorder %s28, 5
      %p139 = por %p137, %p138
      %p141 = scmp.ne.s32.totalorder %s126, %s140
      %p142 = scmp.eq.s32.totalorder %s28, 0
      %p143 = por %p141, %p142
      %s145 = sadd.s32 %s144, 1
      %p148 = scmp.eq.s32.totalorder %s22, 5
      %p149 = scmp.ne.s32.totalorder %s144, %s146
      %p150 = scmp.eq.s32.totalorder %s22, 0
      %p151 = por %p149, %p150
      %p152 = scmp.ne.s32.totalorder %s144, %s146
      %p153 = scmp.eq.s32.totalorder %s27, 5
      %p154 = por %p152, %p153
      %p155 = scmp.ne.s32.totalorder %s146, %s147
      %p156 = scmp.eq.s32.totalorder %s27, 0
      %p157 = por %p155, %p156
      %p158 = scmp.ne.s32.totalorder %s146, %s147
      %p159 = scmp.eq.s32.totalorder %s28, 5
      %p160 = por %p158, %p159
      %p162 = scmp.ne.s32.totalorder %s147, %s161
      %p163 = scmp.eq.s32.totalorder %s28, 0
      %p164 = por %p162, %p163
      %s166 = sadd.s32 %s165, 1
      %p169 = scmp.eq.s32.totalorder %s22, 5
      %p170 = scmp.ne.s32.totalorder %s165, %s167
      %p171 = scmp.eq.s32.totalorder %s22, 0
      %p172 = por %p170, %p171
      %p173 = scmp.ne.s32.totalorder %s165, %s167
      %p174 = scmp.eq.s32.totalorder %s27, 5
      %p175 = por %p173, %p174
      %p176 = scmp.ne.s32.totalorder %s167, %s168
      %p177 = scmp.eq.s32.totalorder %s27, 0
      %p178 = por %p176, %p177
      %p179 = scmp.ne.s32.totalorder %s167, %s168
      %p180 = scmp.eq.s32.totalorder %s28, 5
      %p181 = por %p179, %p180
      %p183 = scmp.ne.s32.totalorder %s168, %s182
      %p184 = scmp.eq.s32.totalorder %s28, 0
      %p185 = por %p183, %p184
      %s187 = sadd.s32 %s186, 1
      %p190 = scmp.eq.s32.totalorder %s22, 5
      %p191 = scmp.ne.s32.totalorder %s186, %s188
      %p192 = scmp.eq.s32.totalorder %s22, 0
      %p193 = por %p191, %p192
      %p194 = scmp.ne.s32.totalorder %s186, %s188
      %p195 = scmp.eq.s32.totalorder %s27, 5
      %p196 = por %p194, %p195
      %p197 = scmp.ne.s32.totalorder %s188, %s189
      %p198 = scmp.eq.s32.totalorder %s27, 0
      %p199 = por %p197, %p198
      %p200 = scmp.ne.s32.totalorder %s188, %s189
      %p201 = scmp.eq.s32.totalorder %s28, 5
      %p202 = por %p200, %p201
      %p204 = scmp.ne.s32.totalorder %s189, %s203
      %p205 = scmp.eq.s32.totalorder %s28, 0
      %p206 = por %p204, %p205
      %s207 = ssub.s32 %s29, %s48
      %s208 = ssub.s32 %s30, %s44
      %s209 = sor.u32 %s207, %s208
      %p210 = scmp.eq.s32.totalorder %s209, 0
      %s212 = sadd.s32 %s211, 1
      %s213 = scalar_select %p210, %s211, %s212
      %p216 = pneg %p210
      %p217 = scmp.eq.s32.totalorder %s22, 5
      %p218 = por %p216, %p217
      %p219 = scmp.ne.s32.totalorder %s211, %s214
      %p220 = scmp.eq.s32.totalorder %s22, 0
      %p221 = por %p219, %p220
      %p222 = scmp.ne.s32.totalorder %s211, %s214
      %p223 = scmp.eq.s32.totalorder %s27, 5
      %p224 = por %p222, %p223
      %p225 = scmp.ne.s32.totalorder %s214, %s215
      %p226 = scmp.eq.s32.totalorder %s27, 0
      %p227 = por %p225, %p226
      %p228 = scmp.ne.s32.totalorder %s214, %s215
      %p229 = scmp.eq.s32.totalorder %s28, 5
      %p230 = por %p228, %p229
      %p232 = scmp.ne.s32.totalorder %s215, %s231
      %p233 = scmp.eq.s32.totalorder %s28, 0
      %p234 = por %p232, %p233
      %p235 = scmp.le.s32.totalorder 1, %s22
      %p236 = scmp.lt.s32.totalorder %s22, 7
      %p237 = pnand %p235, %p236
      %p238 = pneg %p237
      // Predicated region
      $region9: #{tpu_custom_call.1} parent=5 // pred_check
        _
      $region10: #{tpu_custom_call.1} parent=5 // pred_check_branch
        %240 = sbr.rel (%p237) target = $region12
      $region11: #{tpu_custom_call.1} parent=5 // pred_region
        %s241 = ssub.s32 %s22, 1
        // Predicated region
        $region13: #{tpu_custom_call.1} parent=11 // pred_check
          %p242 = pneg %p94
        $region14: #{tpu_custom_call.1} parent=11 // pred_check_branch
          %244 = sbr.rel (%p242) target = $region16
        $region15: #{tpu_custom_call.1} parent=11 // pred_region
          %s246 = ssub.s32 512, 512
          %247 = vsyncadd [#allocation7], %s246
          %s248 = sshll.u32 [#allocation6], 4
          %s249 = int_to_ptr.vmem [resolvable:$true] %s248
          %254 = dma.hbm_to_vmem [thread:$0]  %s1, 512, %s249, [#allocation7], 64, 64, 4
        $region16: #{tpu_custom_call.1} parent=11 // pred_fallthru
          _
        // Predicated region
        $region17: #{tpu_custom_call.1} parent=11 // pred_check
          %p255 = pneg %p115
        $region18: #{tpu_custom_call.1} parent=11 // pred_check_branch
          %257 = sbr.rel (%p255) target = $region20
        $region19: #{tpu_custom_call.1} parent=11 // pred_region
          %s259 = ssub.s32 16, 16
          %260 = vsyncadd [#allocation7], %s259
          %s262 = sshll.u32 [#allocation8], 4
          %s263 = int_to_ptr.vmem [resolvable:$true] %s262
          %265 = dma.hbm_to_vmem [thread:$0]  %s2, 16, %s263, [#allocation7]
        $region20: #{tpu_custom_call.1} parent=11 // pred_fallthru
          _
        // Predicated region
        $region21: #{tpu_custom_call.1} parent=11 // pred_check
          %p266 = pneg %p136
        $region22: #{tpu_custom_call.1} parent=11 // pred_check_branch
          %268 = sbr.rel (%p266) target = $region24
        $region23: #{tpu_custom_call.1} parent=11 // pred_region
          %s270 = ssub.s32 512, 512
          %271 = vsyncadd [#allocation10], %s270
          %s272 = sshll.u32 [#allocation9], 4
          %s273 = int_to_ptr.vmem [resolvable:$true] %s272
          %278 = dma.hbm_to_vmem [thread:$0]  %s3, 512, %s273, [#allocation10], 64, 64, 4
        $region24: #{tpu_custom_call.1} parent=11 // pred_fallthru
          _
        // Predicated region
        $region25: #{tpu_custom_call.1} parent=11 // pred_check
          %p279 = pneg %p157
        $region26: #{tpu_custom_call.1} parent=11 // pred_check_branch
          %281 = sbr.rel (%p279) target = $region28
        $region27: #{tpu_custom_call.1} parent=11 // pred_region
          %s283 = ssub.s32 16, 16
          %284 = vsyncadd [#allocation10], %s283
          %s286 = sshll.u32 [#allocation11], 4
          %s287 = int_to_ptr.vmem [resolvable:$true] %s286
          %289 = dma.hbm_to_vmem [thread:$0]  %s4, 16, %s287, [#allocation10]
        $region28: #{tpu_custom_call.1} parent=11 // pred_fallthru
          _
        // Predicated region
        $region29: #{tpu_custom_call.1} parent=11 // pred_check
          %p290 = pneg %p178
        $region30: #{tpu_custom_call.1} parent=11 // pred_check_branch
          %292 = sbr.rel (%p290) target = $region32
        $region31: #{tpu_custom_call.1} parent=11 // pred_region
          %s294 = ssub.s32 8192, 8192
          %295 = vsyncadd [#allocation13], %s294
          %s296 = sshll.u32 [#allocation12], 4
          %s297 = int_to_ptr.vmem [resolvable:$true] %s296
          %302 = dma.hbm_to_vmem [thread:$0]  %s5, 8192, %s297, [#allocation13], 512, 512, 32
        $region32: #{tpu_custom_call.1} parent=11 // pred_fallthru
          _
        // Predicated region
        $region33: #{tpu_custom_call.1} parent=11 // pred_check
          %p303 = pneg %p199
        $region34: #{tpu_custom_call.1} parent=11 // pred_check_branch
          %305 = sbr.rel (%p303) target = $region36
        $region35: #{tpu_custom_call.1} parent=11 // pred_region
          %s307 = ssub.s32 128, 128
          %308 = vsyncadd [#allocation13], %s307
          %s310 = sshll.u32 [#allocation14], 4
          %s311 = int_to_ptr.vmem [resolvable:$true] %s310
          %313 = dma.hbm_to_vmem [thread:$0]  %s6, 128, %s311, [#allocation13]
        $region36: #{tpu_custom_call.1} parent=11 // pred_fallthru
          _
      $region12: #{tpu_custom_call.1} parent=5 // pred_fallthru
        _
      %p314 = scmp.lt.s32.totalorder %s22, 6
      // Predicated region
      $region37: #{tpu_custom_call.1} parent=5 // pred_check
        %p315 = pneg %p314
      $region38: #{tpu_custom_call.1} parent=5 // pred_check_branch
        %317 = sbr.rel (%p315) target = $region40
      $region39: #{tpu_custom_call.1} parent=5 // pred_region
        // Predicated region
        $region41: #{tpu_custom_call.1} parent=39 // pred_check
          %p318 = pneg %p67
        $region42: #{tpu_custom_call.1} parent=39 // pred_check_branch
          %320 = sbr.rel (%p318) target = $region44
        $region43: #{tpu_custom_call.1} parent=39 // pred_region
          %s321 = sand.u32 %s57, 1
          %s322 = scalar_lea.sflag [#allocation4], %s321
          %s323 = sand.u32 %s57, 1
          %s324 = smul.addr %s323, 64
          %s325 = scalar_lea.vmem [#allocation3], %s324
          %s326 = smul.u32 %s29, 3
          %s327 = sadd.s32 %s326, %s31
          %s329 = ssub.s32 1024, 1024
          %330 = vsyncadd %s322, %s329
          %s331 = smul.addr %s30, 24
          %s332 = sadd.s32 %s327, %s331
          %s333 = smul.addr %s332, 128
          %s334 = scalar_lea.hbm %s0, %s333
          %s335 = sshll.u32 %s325, 4
          %s336 = int_to_ptr.vmem [resolvable:$true] %s335
          %341 = dma.hbm_to_vmem [thread:$0]  %s334, 1024, %s336, %s322, 384, 128, 8
        $region44: #{tpu_custom_call.1} parent=39 // pred_fallthru
          _
      $region40: #{tpu_custom_call.1} parent=5 // pred_fallthru
        _
      %p342 = scmp.le.s32.totalorder 1, %s22
      %p343 = scmp.lt.s32.totalorder %s22, 7
      %p344 = pnand %p342, %p343
      %p345 = pneg %p344
      // Predicated region
      $region45: #{tpu_custom_call.1} parent=5 // pred_check
        _
      $region46: #{tpu_custom_call.1} parent=5 // pred_check_branch
        %347 = sbr.rel (%p344) target = $region48
      $region47: #{tpu_custom_call.1} parent=5 // pred_region
        %s348 = ssub.s32 %s22, 1
        %s349 = sand.u32 %s60, 1
        %s350 = scalar_lea.sflag [#allocation4], %s349
        %s351 = sand.u32 %s60, 1
        %s352 = smul.addr %s351, 64
        %s353 = scalar_lea.vmem [#allocation3], %s352
        // Predicated region
        $region49: #{tpu_custom_call.1} parent=47 // pred_check
          %p354 = pneg %p73
        $region50: #{tpu_custom_call.1} parent=47 // pred_check_branch
          %356 = sbr.rel (%p354) target = $region52
        $region51: #{tpu_custom_call.1} parent=47 // pred_region
          %357 = dma.done %s350, 1024
        $region52: #{tpu_custom_call.1} parent=47 // pred_fallthru
          _
        // Predicated region
        $region53: #{tpu_custom_call.1} parent=47 // pred_check
          %p358 = pneg %p94
        $region54: #{tpu_custom_call.1} parent=47 // pred_check_branch
          %360 = sbr.rel (%p358) target = $region56
        $region55: #{tpu_custom_call.1} parent=47 // pred_region
          %361 = dma.done [#allocation7], 512
        $region56: #{tpu_custom_call.1} parent=47 // pred_fallthru
          _
        // Predicated region
        $region57: #{tpu_custom_call.1} parent=47 // pred_check
          %p362 = pneg %p115
        $region58: #{tpu_custom_call.1} parent=47 // pred_check_branch
          %364 = sbr.rel (%p362) target = $region60
        $region59: #{tpu_custom_call.1} parent=47 // pred_region
          %365 = dma.done [#allocation7], 16
        $region60: #{tpu_custom_call.1} parent=47 // pred_fallthru
          _
        // Predicated region
        $region61: #{tpu_custom_call.1} parent=47 // pred_check
          %p366 = pneg %p136
        $region62: #{tpu_custom_call.1} parent=47 // pred_check_branch
          %368 = sbr.rel (%p366) target = $region64
        $region63: #{tpu_custom_call.1} parent=47 // pred_region
          %369 = dma.done [#allocation10], 512
        $region64: #{tpu_custom_call.1} parent=47 // pred_fallthru
          _
        // Predicated region
        $region65: #{tpu_custom_call.1} parent=47 // pred_check
          %p370 = pneg %p157
        $region66: #{tpu_custom_call.1} parent=47 // pred_check_branch
          %372 = sbr.rel (%p370) target = $region68
        $region67: #{tpu_custom_call.1} parent=47 // pred_region
          %373 = dma.done [#allocation10], 16
        $region68: #{tpu_custom_call.1} parent=47 // pred_fallthru
          _
        // Predicated region
        $region69: #{tpu_custom_call.1} parent=47 // pred_check
          %p374 = pneg %p178
        $region70: #{tpu_custom_call.1} parent=47 // pred_check_branch
          %376 = sbr.rel (%p374) target = $region72
        $region71: #{tpu_custom_call.1} parent=47 // pred_region
          %377 = dma.done [#allocation13], 8192
        $region72: #{tpu_custom_call.1} parent=47 // pred_fallthru
          _
        // Predicated region
        $region73: #{tpu_custom_call.1} parent=47 // pred_check
          %p378 = pneg %p199
        $region74: #{tpu_custom_call.1} parent=47 // pred_check_branch
          %380 = sbr.rel (%p378) target = $region76
        $region75: #{tpu_custom_call.1} parent=47 // pred_region
          %381 = dma.done [#allocation13], 128
        $region76: #{tpu_custom_call.1} parent=47 // pred_fallthru
          _
        %s382 = sand.u32 %s60, 1
        %s383 = scalar_lea.sflag [#allocation4], %s382
        %s384 = sand.u32 %s60, 1
        %s385 = smul.addr %s384, 64
        %s386 = scalar_lea.vmem [#allocation3], %s385
        %p387 = pneg %p73
        %p388 = pneg %p70
        %p389 = pneg %p94
        %p390 = pneg %p91
        %p391 = pneg %p115
        %p392 = pneg %p112
        %p393 = pneg %p136
        %p394 = pneg %p133
        %p395 = pneg %p157
        %p396 = pneg %p154
        %p397 = pneg %p178
        %p398 = pneg %p175
        %p399 = pneg %p199
        %p400 = pneg %p196
        %p401 = pneg %p227
        %p402 = pneg %p224
        %s403 = sand.u32 %s214, 1
        %s404 = scalar_lea.sflag [#allocation5], %s403
        %s405 = sand.u32 %s214, 1
        %s406 = smul.addr %s405, 8
        %s407 = scalar_lea.vmem [#allocation15], %s406
        %s408 = smul.u32 %s32, 3
        %s409 = sadd.s32 %s408, %s34
        %p411 = scmp.eq.s32.totalorder %s34, 0
        // Predicated region
        $region77: #{tpu_custom_call.1} parent=47 // pred_check
          %p412 = pneg %p411
        $region78: #{tpu_custom_call.1} parent=47 // pred_check_branch
          %414 = sbr.rel (%p412) target = $region80
        $region79: #{tpu_custom_call.1} parent=47 // pred_region
          %415 = vst [vmem:[#allocation2] sm:$0xff] 0.0
          %416 = vst [vmem:[#allocation2 + $0x8] sm:$0xff] 0.0
          %417 = vst [vmem:[#allocation2 + $0x10] sm:$0xff] 0.0
          %418 = vst [vmem:[#allocation2 + $0x18] sm:$0xff] 0.0
          %419 = vst [vmem:[#allocation2 + $0x20] sm:$0xff] 0.0
          %420 = vst [vmem:[#allocation2 + $0x28] sm:$0xff] 0.0
          %421 = vst [vmem:[#allocation2 + $0x30] sm:$0xff] 0.0
          %422 = vst [vmem:[#allocation2 + $0x38] sm:$0xff] 0.0
        $region80: #{tpu_custom_call.1} parent=47 // pred_fallthru
          _
        %v423 = vld [vmem:[%s353] sm:$0xff]
        %v424 = vld [vmem:[%s353 + $0x8] sm:$0xff]
        %v425 = vld [vmem:[%s353 + $0x10] sm:$0xff]
        %v426 = vld [vmem:[%s353 + $0x18] sm:$0xff]
        %v427 = vld [vmem:[%s353 + $0x20] sm:$0xff]
        %v428 = vld [vmem:[%s353 + $0x28] sm:$0xff]
        %v429 = vld [vmem:[%s353 + $0x30] sm:$0xff]
        %v430 = vld [vmem:[%s353 + $0x38] sm:$0xff]
        %v431 = vpack.c.bf16 %v424, %v423
        %v432 = vpack.c.bf16 %v426, %v425
        %v433 = vpack.c.bf16 %v428, %v427
        %v434 = vpack.c.bf16 %v430, %v429
        %v435 = vld [vmem:[#allocation6] sm:$0xf]
        %v436 = vld [vmem:[#allocation6 + $0x4] sm:$0xf]
        %v437 = vld [vmem:[#allocation6 + $0x8] sm:$0xf]
        %v438 = vld [vmem:[#allocation6 + $0xc] sm:$0xf]
        %v439 = vld [vmem:[#allocation6 + $0x10] sm:$0xf]
        %v440 = vld [vmem:[#allocation6 + $0x14] sm:$0xf]
        %v441 = vld [vmem:[#allocation6 + $0x18] sm:$0xf]
        %v442 = vld [vmem:[#allocation6 + $0x1c] sm:$0xf]
        %v443 = vld [vmem:[#allocation8] sm:$0x1]
        %v445 = vlaneseq
        %v446 = vshrl.u32 %v445, 7
        %v447 = vsub.s32 0, %v446
        %v448 = vrot.slane %v443, %v447
        %450 = vxpose.xlu0.c.b16.start [1/8] %v431, 128
        %451 = vxpose.xlu0.c.b16.cont [2/8] %v432, 128
        %452 = vxpose.xlu0.c.b16.cont [3/8] %v433, 128
        %453 = vxpose.xlu0.c.b16.cont [4/8] %v434, 128
        %454 = vxpose.xlu0.c.b16.cont [5/8] 0, 128
        %455 = vxpose.xlu0.c.b16.cont [6/8] 0, 128
        %456 = vxpose.xlu0.c.b16.cont [7/8] 0, 128
        %457 = vxpose.xlu0.c.b16.end [8/8] 0, 128
        %v458 = vpop.trf.xlu0
        %v459 = vpop.trf.xlu0
        %v460 = vpop.trf.xlu0
        %v461 = vpop.trf.xlu0
        %v462 = vpop.trf.xlu0
        %v463 = vpop.trf.xlu0
        %v464 = vpop.trf.xlu0
        %v465 = vpop.trf.xlu0
        %v474 = vunpack.c.l.b16 %v435
        %v475 = vunpack.c.l.b16 %v436
        %v476 = vunpack.c.l.b16 %v437
        %v477 = vunpack.c.l.b16 %v438
        %v478 = vunpack.c.l.b16 %v439
        %v479 = vunpack.c.l.b16 %v440
        %v480 = vunpack.c.l.b16 %v441
        %v481 = vunpack.c.l.b16 %v442
        %v482 = vpack.c.b16 %v475, %v474
        %v483 = vpack.c.b16 %v477, %v476
        %v484 = vpack.c.b16 %v479, %v478
        %v485 = vpack.c.b16 %v481, %v480
        %vm490 = vcmask 523264
        %v492 = vsel %vm490, %v458, 0
        %v495 = vsel %vm490, %v459, 0
        %v498 = vsel %vm490, %v460, 0
        %v501 = vsel %vm490, %v461, 0
        %v504 = vsel %vm490, %v462, 0
        %v507 = vsel %vm490, %v463, 0
        %v510 = vsel %vm490, %v464, 0
        %v513 = vsel %vm490, %v465, 0
        %515 = vmatprep.subr.bf16.mxu0 0
        %516 = vmatpush1.bf16.msra.mxu0 %v482
        %517 = vmatprep.subr.bf16.mxu0 0
        %518 = vmatpush1.bf16.msra.mxu0 %v483
        %519 = vmatprep.subr.bf16.mxu0 0
        %520 = vmatpush1.bf16.msra.mxu0 %v484
        %521 = vmatprep.subr.bf16.mxu0 0
        %522 = vmatpush1.bf16.msra.mxu0 %v485
        %523 = vmatprep.subr.bf16.mxu0 0
        %524 = vmatpush1.bf16.msra.mxu0 0
        %525 = vmatprep.subr.bf16.mxu0 0
        %526 = vmatpush1.bf16.msra.mxu0 0
        %527 = vmatprep.subr.bf16.mxu0 0
        %528 = vmatpush1.bf16.msra.mxu0 0
        %529 = vmatprep.subr.bf16.mxu0 0
        %530 = vmatpush1.bf16.msra.mxu0 0
        %531 = vmatprep.subr.bf16.mxu0 0
        %532 = vmatpush1.bf16.msra.mxu0 0
        %533 = vmatprep.subr.bf16.mxu0 0
        %534 = vmatpush1.bf16.msra.mxu0 0
        %535 = vmatprep.subr.bf16.mxu0 0
        %536 = vmatpush1.bf16.msra.mxu0 0
        %537 = vmatprep.subr.bf16.mxu0 0
        %538 = vmatpush1.bf16.msra.mxu0 0
        %539 = vmatprep.subr.bf16.mxu0 0
        %540 = vmatpush1.bf16.msra.mxu0 0
        %541 = vmatprep.subr.bf16.mxu0 0
        %542 = vmatpush1.bf16.msra.mxu0 0
        %543 = vmatprep.subr.bf16.mxu0 0
        %544 = vmatpush1.bf16.msra.mxu0 0
        %545 = vmatprep.subr.bf16.mxu0 0
        %546 = vmatpush1.bf16.msra.mxu0 0
        %547 = vmatprep.mubr.bf16.mxu0 0
        %548 = vmatmul.mubr.bf16.gmra.mrb[0].mxu0 %v492
        %v549 = vpop.f32.mrb[0].mxu0
        %v550 = vadd.f32 %v448, %v549
        %v551 = vpop.f32.mrb[0].mxu0
        %v552 = vpop.f32.mrb[0].mxu0
        %v553 = vadd.f32 %v448, %v552
        %v554 = vpop.f32.mrb[0].mxu0
        %555 = vmatprep.mubr.bf16.mxu0 0
        %556 = vmatmul.mubr.bf16.gmra.mrb[0].mxu0 %v495
        %v557 = vpop.f32.mrb[0].mxu0
        %v558 = vadd.f32 %v448, %v557
        %v559 = vpop.f32.mrb[0].mxu0
        %v560 = vpop.f32.mrb[0].mxu0
        %v561 = vadd.f32 %v448, %v560
        %v562 = vpop.f32.mrb[0].mxu0
        %563 = vmatprep.mubr.bf16.mxu0 0
        %564 = vmatmul.mubr.bf16.gmra.mrb[0].mxu0 %v498
        %v565 = vpop.f32.mrb[0].mxu0
        %v566 = vadd.f32 %v448, %v565
        %v567 = vpop.f32.mrb[0].mxu0
        %v568 = vpop.f32.mrb[0].mxu0
        %v569 = vadd.f32 %v448, %v568
        %v570 = vpop.f32.mrb[0].mxu0
        %571 = vmatprep.mubr.bf16.mxu0 0
        %572 = vmatmul.mubr.bf16.gmra.mrb[0].mxu0 %v501
        %v573 = vpop.f32.mrb[0].mxu0
        %v574 = vadd.f32 %v448, %v573
        %v575 = vpop.f32.mrb[0].mxu0
        %v576 = vpop.f32.mrb[0].mxu0
        %v577 = vadd.f32 %v448, %v576
        %v578 = vpop.f32.mrb[0].mxu0
        %579 = vmatprep.mubr.bf16.mxu0 0
        %580 = vmatmul.mubr.bf16.gmra.mrb[0].mxu0 %v504
        %v581 = vpop.f32.mrb[0].mxu0
        %v582 = vadd.f32 %v448, %v581
        %v583 = vpop.f32.mrb[0].mxu0
        %v584 = vpop.f32.mrb[0].mxu0
        %v585 = vadd.f32 %v448, %v584
        %v586 = vpop.f32.mrb[0].mxu0
        %587 = vmatprep.mubr.bf16.mxu0 0
        %588 = vmatmul.mubr.bf16.gmra.mrb[0].mxu0 %v507
        %v589 = vpop.f32.mrb[0].mxu0
        %v590 = vadd.f32 %v448, %v589
        %v591 = vpop.f32.mrb[0].mxu0
        %v592 = vpop.f32.mrb[0].mxu0
        %v593 = vadd.f32 %v448, %v592
        %v594 = vpop.f32.mrb[0].mxu0
        %595 = vmatprep.mubr.bf16.mxu0 0
        %596 = vmatmul.mubr.bf16.gmra.mrb[0].mxu0 %v510
        %v597 = vpop.f32.mrb[0].mxu0
        %v598 = vadd.f32 %v448, %v597
        %v599 = vpop.f32.mrb[0].mxu0
        %v600 = vpop.f32.mrb[0].mxu0
        %v601 = vadd.f32 %v448, %v600
        %v602 = vpop.f32.mrb[0].mxu0
        %603 = vmatprep.mubr.bf16.mxu0 0
        %604 = vmatmul.mubr.bf16.gmra.mrb[0].mxu0 %v513
        %v605 = vpop.f32.mrb[0].mxu0
        %v606 = vadd.f32 %v448, %v605
        %v607 = vpop.f32.mrb[0].mxu0
        %v608 = vpop.f32.mrb[0].mxu0
        %v609 = vadd.f32 %v448, %v608
        %v610 = vpop.f32.mrb[0].mxu0
        %611 = vdwg.mxu0
        %v612 = vmax.f32 %v550, 0.0
        %v613 = vmax.f32 %v553, 0.0
        %v614 = vmax.f32 %v558, 0.0
        %v615 = vmax.f32 %v561, 0.0
        %v616 = vmax.f32 %v566, 0.0
        %v617 = vmax.f32 %v569, 0.0
        %v618 = vmax.f32 %v574, 0.0
        %v619 = vmax.f32 %v577, 0.0
        %v620 = vmax.f32 %v582, 0.0
        %v621 = vmax.f32 %v585, 0.0
        %v622 = vmax.f32 %v590, 0.0
        %v623 = vmax.f32 %v593, 0.0
        %v624 = vmax.f32 %v598, 0.0
        %v625 = vmax.f32 %v601, 0.0
        %v626 = vmax.f32 %v606, 0.0
        %v627 = vmax.f32 %v609, 0.0
        %v628 = vpack.c.bf16 %v613, %v612
        %v629 = vpack.c.bf16 %v615, %v614
        %v630 = vpack.c.bf16 %v617, %v616
        %v631 = vpack.c.bf16 %v619, %v618
        %v632 = vpack.c.bf16 %v621, %v620
        %v633 = vpack.c.bf16 %v623, %v622
        %v634 = vpack.c.bf16 %v625, %v624
        %v635 = vpack.c.bf16 %v627, %v626
        %v636 = vld [vmem:[#allocation9] sm:$0xf]
        %v637 = vld [vmem:[#allocation9 + $0x4] sm:$0xf]
        %v638 = vld [vmem:[#allocation9 + $0x8] sm:$0xf]
        %v639 = vld [vmem:[#allocation9 + $0xc] sm:$0xf]
        %v640 = vld [vmem:[#allocation9 + $0x10] sm:$0xf]
        %v641 = vld [vmem:[#allocation9 + $0x14] sm:$0xf]
        %v642 = vld [vmem:[#allocation9 + $0x18] sm:$0xf]
        %v643 = vld [vmem:[#allocation9 + $0x1c] sm:$0xf]
        %v644 = vld [vmem:[#allocation11] sm:$0x1]
        %v646 = vlaneseq
        %v647 = vshrl.u32 %v646, 7
        %v648 = vsub.s32 0, %v647
        %v649 = vrot.slane %v644, %v648
        %v659 = vunpack.c.l.b16 %v636
        %v660 = vunpack.c.l.b16 %v637
        %v661 = vunpack.c.l.b16 %v638
        %v662 = vunpack.c.l.b16 %v639
        %v663 = vunpack.c.l.b16 %v640
        %v664 = vunpack.c.l.b16 %v641
        %v665 = vunpack.c.l.b16 %v642
        %v666 = vunpack.c.l.b16 %v643
        %v667 = vpack.c.b16 %v660, %v659
        %v668 = vpack.c.b16 %v662, %v661
        %v669 = vpack.c.b16 %v664, %v663
        %v670 = vpack.c.b16 %v666, %v665
        %v676 = vsel %vm490, %v628, 0
        %v679 = vsel %vm490, %v629, 0
        %v682 = vsel %vm490, %v630, 0
        %v685 = vsel %vm490, %v631, 0
        %v688 = vsel %vm490, %v632, 0
        %v691 = vsel %vm490, %v633, 0
        %v694 = vsel %vm490, %v634, 0
        %v697 = vsel %vm490, %v635, 0
        %699 = vmatprep.subr.bf16.mxu0 0
        %700 = vmatpush1.bf16.msra.mxu0 %v667
        %701 = vmatprep.subr.bf16.mxu0 0
        %702 = vmatpush1.bf16.msra.mxu0 %v668
        %703 = vmatprep.subr.bf16.mxu0 0
        %704 = vmatpush1.bf16.msra.mxu0 %v669
        %705 = vmatprep.subr.bf16.mxu0 0
        %706 = vmatpush1.bf16.msra.mxu0 %v670
        %707 = vmatprep.subr.bf16.mxu0 0
        %708 = vmatpush1.bf16.msra.mxu0 0
        %709 = vmatprep.subr.bf16.mxu0 0
        %710 = vmatpush1.bf16.msra.mxu0 0
        %711 = vmatprep.subr.bf16.mxu0 0
        %712 = vmatpush1.bf16.msra.mxu0 0
        %713 = vmatprep.subr.bf16.mxu0 0
        %714 = vmatpush1.bf16.msra.mxu0 0
        %715 = vmatprep.subr.bf16.mxu0 0
        %716 = vmatpush1.bf16.msra.mxu0 0
        %717 = vmatprep.subr.bf16.mxu0 0
        %718 = vmatpush1.bf16.msra.mxu0 0
        %719 = vmatprep.subr.bf16.mxu0 0
        %720 = vmatpush1.bf16.msra.mxu0 0
        %721 = vmatprep.subr.bf16.mxu0 0
        %722 = vmatpush1.bf16.msra.mxu0 0
        %723 = vmatprep.subr.bf16.mxu0 0
        %724 = vmatpush1.bf16.msra.mxu0 0
        %725 = vmatprep.subr.bf16.mxu0 0
        %726 = vmatpush1.bf16.msra.mxu0 0
        %727 = vmatprep.subr.bf16.mxu0 0
        %728 = vmatpush1.bf16.msra.mxu0 0
        %729 = vmatprep.subr.bf16.mxu0 0
        %730 = vmatpush1.bf16.msra.mxu0 0
        %731 = vmatprep.mubr.bf16.mxu0 0
        %732 = vmatmul.mubr.bf16.gmra.mrb[0].mxu0 %v676
        %v733 = vpop.f32.mrb[0].mxu0
        %v734 = vadd.f32 %v649, %v733
        %v735 = vpop.f32.mrb[0].mxu0
        %v736 = vpop.f32.mrb[0].mxu0
        %v737 = vadd.f32 %v649, %v736
        %v738 = vpop.f32.mrb[0].mxu0
        %739 = vmatprep.mubr.bf16.mxu0 0
        %740 = vmatmul.mubr.bf16.gmra.mrb[0].mxu0 %v679
        %v741 = vpop.f32.mrb[0].mxu0
        %v742 = vadd.f32 %v649, %v741
        %v743 = vpop.f32.mrb[0].mxu0
        %v744 = vpop.f32.mrb[0].mxu0
        %v745 = vadd.f32 %v649, %v744
        %v746 = vpop.f32.mrb[0].mxu0
        %747 = vmatprep.mubr.bf16.mxu0 0
        %748 = vmatmul.mubr.bf16.gmra.mrb[0].mxu0 %v682
        %v749 = vpop.f32.mrb[0].mxu0
        %v750 = vadd.f32 %v649, %v749
        %v751 = vpop.f32.mrb[0].mxu0
        %v752 = vpop.f32.mrb[0].mxu0
        %v753 = vadd.f32 %v649, %v752
        %v754 = vpop.f32.mrb[0].mxu0
        %755 = vmatprep.mubr.bf16.mxu0 0
        %756 = vmatmul.mubr.bf16.gmra.mrb[0].mxu0 %v685
        %v757 = vpop.f32.mrb[0].mxu0
        %v758 = vadd.f32 %v649, %v757
        %v759 = vpop.f32.mrb[0].mxu0
        %v760 = vpop.f32.mrb[0].mxu0
        %v761 = vadd.f32 %v649, %v760
        %v762 = vpop.f32.mrb[0].mxu0
        %763 = vmatprep.mubr.bf16.mxu0 0
        %764 = vmatmul.mubr.bf16.gmra.mrb[0].mxu0 %v688
        %v765 = vpop.f32.mrb[0].mxu0
        %v766 = vadd.f32 %v649, %v765
        %v767 = vpop.f32.mrb[0].mxu0
        %v768 = vpop.f32.mrb[0].mxu0
        %v769 = vadd.f32 %v649, %v768
        %v770 = vpop.f32.mrb[0].mxu0
        %771 = vmatprep.mubr.bf16.mxu0 0
        %772 = vmatmul.mubr.bf16.gmra.mrb[0].mxu0 %v691
        %v773 = vpop.f32.mrb[0].mxu0
        %v774 = vadd.f32 %v649, %v773
        %v775 = vpop.f32.mrb[0].mxu0
        %v776 = vpop.f32.mrb[0].mxu0
        %v777 = vadd.f32 %v649, %v776
        %v778 = vpop.f32.mrb[0].mxu0
        %779 = vmatprep.mubr.bf16.mxu0 0
        %780 = vmatmul.mubr.bf16.gmra.mrb[0].mxu0 %v694
        %v781 = vpop.f32.mrb[0].mxu0
        %v782 = vadd.f32 %v649, %v781
        %v783 = vpop.f32.mrb[0].mxu0
        %v784 = vpop.f32.mrb[0].mxu0
        %v785 = vadd.f32 %v649, %v784
        %v786 = vpop.f32.mrb[0].mxu0
        %787 = vmatprep.mubr.bf16.mxu0 0
        %788 = vmatmul.mubr.bf16.gmra.mrb[0].mxu0 %v697
        %v789 = vpop.f32.mrb[0].mxu0
        %v790 = vadd.f32 %v649, %v789
        %v791 = vpop.f32.mrb[0].mxu0
        %v792 = vpop.f32.mrb[0].mxu0
        %v793 = vadd.f32 %v649, %v792
        %v794 = vpop.f32.mrb[0].mxu0
        %795 = vdwg.mxu0
        %v796 = vmax.f32 %v734, 0.0
        %v797 = vmax.f32 %v737, 0.0
        %v798 = vmax.f32 %v742, 0.0
        %v799 = vmax.f32 %v745, 0.0
        %v800 = vmax.f32 %v750, 0.0
        %v801 = vmax.f32 %v753, 0.0
        %v802 = vmax.f32 %v758, 0.0
        %v803 = vmax.f32 %v761, 0.0
        %v804 = vmax.f32 %v766, 0.0
        %v805 = vmax.f32 %v769, 0.0
        %v806 = vmax.f32 %v774, 0.0
        %v807 = vmax.f32 %v777, 0.0
        %v808 = vmax.f32 %v782, 0.0
        %v809 = vmax.f32 %v785, 0.0
        %v810 = vmax.f32 %v790, 0.0
        %v811 = vmax.f32 %v793, 0.0
        %v812 = vpack.c.bf16 %v797, %v796
        %v813 = vpack.c.bf16 %v799, %v798
        %v814 = vpack.c.bf16 %v801, %v800
        %v815 = vpack.c.bf16 %v803, %v802
        %v816 = vpack.c.bf16 %v805, %v804
        %v817 = vpack.c.bf16 %v807, %v806
        %v818 = vpack.c.bf16 %v809, %v808
        %v819 = vpack.c.bf16 %v811, %v810
        %v820 = vld [vmem:[#allocation12] sm:$0xff]
        %v821 = vld [vmem:[#allocation12 + $0x8] sm:$0xff]
        %v822 = vld [vmem:[#allocation12 + $0x10] sm:$0xff]
        %v823 = vld [vmem:[#allocation12 + $0x18] sm:$0xff]
        %v824 = vld [vmem:[#allocation12 + $0x20] sm:$0xff]
        %v825 = vld [vmem:[#allocation12 + $0x28] sm:$0xff]
        %v826 = vld [vmem:[#allocation12 + $0x30] sm:$0xff]
        %v827 = vld [vmem:[#allocation12 + $0x38] sm:$0xff]
        %v828 = vld [vmem:[#allocation12 + $0x40] sm:$0xff]
        %v829 = vld [vmem:[#allocation12 + $0x48] sm:$0xff]
        %v830 = vld [vmem:[#allocation12 + $0x50] sm:$0xff]
        %v831 = vld [vmem:[#allocation12 + $0x58] sm:$0xff]
        %v832 = vld [vmem:[#allocation12 + $0x60] sm:$0xff]
        %v833 = vld [vmem:[#allocation12 + $0x68] sm:$0xff]
        %v834 = vld [vmem:[#allocation12 + $0x70] sm:$0xff]
        %v835 = vld [vmem:[#allocation12 + $0x78] sm:$0xff]
        %v836 = vld [vmem:[#allocation12 + $0x80] sm:$0xff]
        %v837 = vld [vmem:[#allocation12 + $0x88] sm:$0xff]
        %v838 = vld [vmem:[#allocation12 + $0x90] sm:$0xff]
        %v839 = vld [vmem:[#allocation12 + $0x98] sm:$0xff]
        %v840 = vld [vmem:[#allocation12 + $0xa0] sm:$0xff]
        %v841 = vld [vmem:[#allocation12 + $0xa8] sm:$0xff]
        %v842 = vld [vmem:[#allocation12 + $0xb0] sm:$0xff]
        %v843 = vld [vmem:[#allocation12 + $0xb8] sm:$0xff]
        %v844 = vld [vmem:[#allocation12 + $0xc0] sm:$0xff]
        %v845 = vld [vmem:[#allocation12 + $0xc8] sm:$0xff]
        %v846 = vld [vmem:[#allocation12 + $0xd0] sm:$0xff]
        %v847 = vld [vmem:[#allocation12 + $0xd8] sm:$0xff]
        %v848 = vld [vmem:[#allocation12 + $0xe0] sm:$0xff]
        %v849 = vld [vmem:[#allocation12 + $0xe8] sm:$0xff]
        %v850 = vld [vmem:[#allocation12 + $0xf0] sm:$0xff]
        %v851 = vld [vmem:[#allocation12 + $0xf8] sm:$0xff]
        %v852 = vld [vmem:[#allocation12 + $0x100] sm:$0xff]
        %v853 = vld [vmem:[#allocation12 + $0x108] sm:$0xff]
        %v854 = vld [vmem:[#allocation12 + $0x110] sm:$0xff]
        %v855 = vld [vmem:[#allocation12 + $0x118] sm:$0xff]
        %v856 = vld [vmem:[#allocation12 + $0x120] sm:$0xff]
        %v857 = vld [vmem:[#allocation12 + $0x128] sm:$0xff]
        %v858 = vld [vmem:[#allocation12 + $0x130] sm:$0xff]
        %v859 = vld [vmem:[#allocation12 + $0x138] sm:$0xff]
        %v860 = vld [vmem:[#allocation12 + $0x140] sm:$0xff]
        %v861 = vld [vmem:[#allocation12 + $0x148] sm:$0xff]
        %v862 = vld [vmem:[#allocation12 + $0x150] sm:$0xff]
        %v863 = vld [vmem:[#allocation12 + $0x158] sm:$0xff]
        %v864 = vld [vmem:[#allocation12 + $0x160] sm:$0xff]
        %v865 = vld [vmem:[#allocation12 + $0x168] sm:$0xff]
        %v866 = vld [vmem:[#allocation12 + $0x170] sm:$0xff]
        %v867 = vld [vmem:[#allocation12 + $0x178] sm:$0xff]
        %v868 = vld [vmem:[#allocation12 + $0x180] sm:$0xff]
        %v869 = vld [vmem:[#allocation12 + $0x188] sm:$0xff]
        %v870 = vld [vmem:[#allocation12 + $0x190] sm:$0xff]
        %v871 = vld [vmem:[#allocation12 + $0x198] sm:$0xff]
        %v872 = vld [vmem:[#allocation12 + $0x1a0] sm:$0xff]
        %v873 = vld [vmem:[#allocation12 + $0x1a8] sm:$0xff]
        %v874 = vld [vmem:[#allocation12 + $0x1b0] sm:$0xff]
        %v875 = vld [vmem:[#allocation12 + $0x1b8] sm:$0xff]
        %v876 = vld [vmem:[#allocation12 + $0x1c0] sm:$0xff]
        %v877 = vld [vmem:[#allocation12 + $0x1c8] sm:$0xff]
        %v878 = vld [vmem:[#allocation12 + $0x1d0] sm:$0xff]
        %v879 = vld [vmem:[#allocation12 + $0x1d8] sm:$0xff]
        %v880 = vld [vmem:[#allocation12 + $0x1e0] sm:$0xff]
        %v881 = vld [vmem:[#allocation12 + $0x1e8] sm:$0xff]
        %v882 = vld [vmem:[#allocation12 + $0x1f0] sm:$0xff]
        %v883 = vld [vmem:[#allocation12 + $0x1f8] sm:$0xff]
        %v884 = vld [vmem:[#allocation14] sm:$0xff]
        %v886 = vlaneseq
        %v887 = vshrl.u32 %v886, 7
        %v888 = vsub.s32 0, %v887
        %v889 = vrot.slane %v884, %v888
        %v890 = vlaneseq
        %v891 = vshrl.u32 %v890, 7
        %v892 = vsub.s32 1, %v891
        %v893 = vrot.slane %v884, %v892
        %v894 = vlaneseq
        %v895 = vshrl.u32 %v894, 7
        %v896 = vsub.s32 2, %v895
        %v897 = vrot.slane %v884, %v896
        %v898 = vlaneseq
        %v899 = vshrl.u32 %v898, 7
        %v900 = vsub.s32 3, %v899
        %v901 = vrot.slane %v884, %v900
        %v902 = vlaneseq
        %v903 = vshrl.u32 %v902, 7
        %v904 = vsub.s32 4, %v903
        %v905 = vrot.slane %v884, %v904
        %v906 = vlaneseq
        %v907 = vshrl.u32 %v906, 7
        %v908 = vsub.s32 5, %v907
        %v909 = vrot.slane %v884, %v908
        %v910 = vlaneseq
        %v911 = vshrl.u32 %v910, 7
        %v912 = vsub.s32 6, %v911
        %v913 = vrot.slane %v884, %v912
        %v914 = vlaneseq
        %v915 = vshrl.u32 %v914, 7
        %v916 = vsub.s32 7, %v915
        %v917 = vrot.slane %v884, %v916
        %v990 = vunpack.c.l.b16 %v820
        %v991 = vunpack.c.h.b16 %v820
        %v992 = vunpack.c.l.b16 %v821
        %v993 = vunpack.c.h.b16 %v821
        %v994 = vunpack.c.l.b16 %v822
        %v995 = vunpack.c.h.b16 %v822
        %v996 = vunpack.c.l.b16 %v823
        %v997 = vunpack.c.h.b16 %v823
        %v998 = vunpack.c.l.b16 %v824
        %v999 = vunpack.c.h.b16 %v824
        %v1000 = vunpack.c.l.b16 %v825
        %v1001 = vunpack.c.h.b16 %v825
        %v1002 = vunpack.c.l.b16 %v826
        %v1003 = vunpack.c.h.b16 %v826
        %v1004 = vunpack.c.l.b16 %v827
        %v1005 = vunpack.c.h.b16 %v827
        %v1006 = vunpack.c.l.b16 %v828
        %v1007 = vunpack.c.h.b16 %v828
        %v1008 = vunpack.c.l.b16 %v829
        %v1009 = vunpack.c.h.b16 %v829
        %v1010 = vunpack.c.l.b16 %v830
        %v1011 = vunpack.c.h.b16 %v830
        %v1012 = vunpack.c.l.b16 %v831
        %v1013 = vunpack.c.h.b16 %v831
        %v1014 = vunpack.c.l.b16 %v832
        %v1015 = vunpack.c.h.b16 %v832
        %v1016 = vunpack.c.l.b16 %v833
        %v1017 = vunpack.c.h.b16 %v833
        %v1018 = vunpack.c.l.b16 %v834
        %v1019 = vunpack.c.h.b16 %v834
        %v1020 = vunpack.c.l.b16 %v835
        %v1021 = vunpack.c.h.b16 %v835
        %v1022 = vunpack.c.l.b16 %v836
        %v1023 = vunpack.c.h.b16 %v836
        %v1024 = vunpack.c.l.b16 %v837
        %v1025 = vunpack.c.h.b16 %v837
        %v1026 = vunpack.c.l.b16 %v838
        %v1027 = vunpack.c.h.b16 %v838
        %v1028 = vunpack.c.l.b16 %v839
        %v1029 = vunpack.c.h.b16 %v839
        %v1030 = vunpack.c.l.b16 %v840
        %v1031 = vunpack.c.h.b16 %v840
        %v1032 = vunpack.c.l.b16 %v841
        %v1033 = vunpack.c.h.b16 %v841
        %v1034 = vunpack.c.l.b16 %v842
        %v1035 = vunpack.c.h.b16 %v842
        %v1036 = vunpack.c.l.b16 %v843
        %v1037 = vunpack.c.h.b16 %v843
        %v1038 = vunpack.c.l.b16 %v844
        %v1039 = vunpack.c.h.b16 %v844
        %v1040 = vunpack.c.l.b16 %v845
        %v1041 = vunpack.c.h.b16 %v845
        %v1042 = vunpack.c.l.b16 %v846
        %v1043 = vunpack.c.h.b16 %v846
        %v1044 = vunpack.c.l.b16 %v847
        %v1045 = vunpack.c.h.b16 %v847
        %v1046 = vunpack.c.l.b16 %v848
        %v1047 = vunpack.c.h.b16 %v848
        %v1048 = vunpack.c.l.b16 %v849
        %v1049 = vunpack.c.h.b16 %v849
        %v1050 = vunpack.c.l.b16 %v850
        %v1051 = vunpack.c.h.b16 %v850
        %v1052 = vunpack.c.l.b16 %v851
        %v1053 = vunpack.c.h.b16 %v851
        %v1054 = vunpack.c.l.b16 %v852
        %v1055 = vunpack.c.h.b16 %v852
        %v1056 = vunpack.c.l.b16 %v853
        %v1057 = vunpack.c.h.b16 %v853
        %v1058 = vunpack.c.l.b16 %v854
        %v1059 = vunpack.c.h.b16 %v854
        %v1060 = vunpack.c.l.b16 %v855
        %v1061 = vunpack.c.h.b16 %v855
        %v1062 = vunpack.c.l.b16 %v856
        %v1063 = vunpack.c.h.b16 %v856
        %v1064 = vunpack.c.l.b16 %v857
        %v1065 = vunpack.c.h.b16 %v857
        %v1066 = vunpack.c.l.b16 %v858
        %v1067 = vunpack.c.h.b16 %v858
        %v1068 = vunpack.c.l.b16 %v859
        %v1069 = vunpack.c.h.b16 %v859
        %v1070 = vunpack.c.l.b16 %v860
        %v1071 = vunpack.c.h.b16 %v860
        %v1072 = vunpack.c.l.b16 %v861
        %v1073 = vunpack.c.h.b16 %v861
        %v1074 = vunpack.c.l.b16 %v862
        %v1075 = vunpack.c.h.b16 %v862
        %v1076 = vunpack.c.l.b16 %v863
        %v1077 = vunpack.c.h.b16 %v863
        %v1078 = vunpack.c.l.b16 %v864
        %v1079 = vunpack.c.h.b16 %v864
        %v1080 = vunpack.c.l.b16 %v865
        %v1081 = vunpack.c.h.b16 %v865
        %v1082 = vunpack.c.l.b16 %v866
        %v1083 = vunpack.c.h.b16 %v866
        %v1084 = vunpack.c.l.b16 %v867
        %v1085 = vunpack.c.h.b16 %v867
        %v1086 = vunpack.c.l.b16 %v868
        %v1087 = vunpack.c.h.b16 %v868
        %v1088 = vunpack.c.l.b16 %v869
        %v1089 = vunpack.c.h.b16 %v869
        %v1090 = vunpack.c.l.b16 %v870
        %v1091 = vunpack.c.h.b16 %v870
        %v1092 = vunpack.c.l.b16 %v871
        %v1093 = vunpack.c.h.b16 %v871
        %v1094 = vunpack.c.l.b16 %v872
        %v1095 = vunpack.c.h.b16 %v872
        %v1096 = vunpack.c.l.b16 %v873
        %v1097 = vunpack.c.h.b16 %v873
        %v1098 = vunpack.c.l.b16 %v874
        %v1099 = vunpack.c.h.b16 %v874
        %v1100 = vunpack.c.l.b16 %v875
        %v1101 = vunpack.c.h.b16 %v875
        %v1102 = vunpack.c.l.b16 %v876
        %v1103 = vunpack.c.h.b16 %v876
        %v1104 = vunpack.c.l.b16 %v877
        %v1105 = vunpack.c.h.b16 %v877
        %v1106 = vunpack.c.l.b16 %v878
        %v1107 = vunpack.c.h.b16 %v878
        %v1108 = vunpack.c.l.b16 %v879
        %v1109 = vunpack.c.h.b16 %v879
        %v1110 = vunpack.c.l.b16 %v880
        %v1111 = vunpack.c.h.b16 %v880
        %v1112 = vunpack.c.l.b16 %v881
        %v1113 = vunpack.c.h.b16 %v881
        %v1114 = vunpack.c.l.b16 %v882
        %v1115 = vunpack.c.h.b16 %v882
        %v1116 = vunpack.c.l.b16 %v883
        %v1117 = vunpack.c.h.b16 %v883
        %v1118 = vpack.c.b16 %v998, %v990
        %v1119 = vpack.c.b16 %v999, %v991
        %v1120 = vpack.c.b16 %v1000, %v992
        %v1121 = vpack.c.b16 %v1001, %v993
        %v1122 = vpack.c.b16 %v1002, %v994
        %v1123 = vpack.c.b16 %v1003, %v995
        %v1124 = vpack.c.b16 %v1004, %v996
        %v1125 = vpack.c.b16 %v1005, %v997
        %v1126 = vpack.c.b16 %v1014, %v1006
        %v1127 = vpack.c.b16 %v1015, %v1007
        %v1128 = vpack.c.b16 %v1016, %v1008
        %v1129 = vpack.c.b16 %v1017, %v1009
        %v1130 = vpack.c.b16 %v1018, %v1010
        %v1131 = vpack.c.b16 %v1019, %v1011
        %v1132 = vpack.c.b16 %v1020, %v1012
        %v1133 = vpack.c.b16 %v1021, %v1013
        %v1134 = vpack.c.b16 %v1030, %v1022
        %v1135 = vpack.c.b16 %v1031, %v1023
        %v1136 = vpack.c.b16 %v1032, %v1024
        %v1137 = vpack.c.b16 %v1033, %v1025
        %v1138 = vpack.c.b16 %v1034, %v1026
        %v1139 = vpack.c.b16 %v1035, %v1027
        %v1140 = vpack.c.b16 %v1036, %v1028
        %v1141 = vpack.c.b16 %v1037, %v1029
        %v1142 = vpack.c.b16 %v1046, %v1038
        %v1143 = vpack.c.b16 %v1047, %v1039
        %v1144 = vpack.c.b16 %v1048, %v1040
        %v1145 = vpack.c.b16 %v1049, %v1041
        %v1146 = vpack.c.b16 %v1050, %v1042
        %v1147 = vpack.c.b16 %v1051, %v1043
        %v1148 = vpack.c.b16 %v1052, %v1044
        %v1149 = vpack.c.b16 %v1053, %v1045
        %v1150 = vpack.c.b16 %v1062, %v1054
        %v1151 = vpack.c.b16 %v1063, %v1055
        %v1152 = vpack.c.b16 %v1064, %v1056
        %v1153 = vpack.c.b16 %v1065, %v1057
        %v1154 = vpack.c.b16 %v1066, %v1058
        %v1155 = vpack.c.b16 %v1067, %v1059
        %v1156 = vpack.c.b16 %v1068, %v1060
        %v1157 = vpack.c.b16 %v1069, %v1061
        %v1158 = vpack.c.b16 %v1078, %v1070
        %v1159 = vpack.c.b16 %v1079, %v1071
        %v1160 = vpack.c.b16 %v1080, %v1072
        %v1161 = vpack.c.b16 %v1081, %v1073
        %v1162 = vpack.c.b16 %v1082, %v1074
        %v1163 = vpack.c.b16 %v1083, %v1075
        %v1164 = vpack.c.b16 %v1084, %v1076
        %v1165 = vpack.c.b16 %v1085, %v1077
        %v1166 = vpack.c.b16 %v1094, %v1086
        %v1167 = vpack.c.b16 %v1095, %v1087
        %v1168 = vpack.c.b16 %v1096, %v1088
        %v1169 = vpack.c.b16 %v1097, %v1089
        %v1170 = vpack.c.b16 %v1098, %v1090
        %v1171 = vpack.c.b16 %v1099, %v1091
        %v1172 = vpack.c.b16 %v1100, %v1092
        %v1173 = vpack.c.b16 %v1101, %v1093
        %v1174 = vpack.c.b16 %v1110, %v1102
        %v1175 = vpack.c.b16 %v1111, %v1103
        %v1176 = vpack.c.b16 %v1112, %v1104
        %v1177 = vpack.c.b16 %v1113, %v1105
        %v1178 = vpack.c.b16 %v1114, %v1106
        %v1179 = vpack.c.b16 %v1115, %v1107
        %v1180 = vpack.c.b16 %v1116, %v1108
        %v1181 = vpack.c.b16 %v1117, %v1109
        %1246 = vmatprep.subr.bf16.mxu0 %v1119
        %1247 = vmatpush1.bf16.msra.mxu0 %v1118
        %1248 = vmatprep.subr.bf16.mxu0 %v1127
        %1249 = vmatpush1.bf16.msra.mxu0 %v1126
        %1250 = vmatprep.subr.bf16.mxu0 %v1135
        %1251 = vmatpush1.bf16.msra.mxu0 %v1134
        %1252 = vmatprep.subr.bf16.mxu0 %v1143
        %1253 = vmatpush1.bf16.msra.mxu0 %v1142
        %1254 = vmatprep.subr.bf16.mxu0 %v1151
        %1255 = vmatpush1.bf16.msra.mxu0 %v1150
        %1256 = vmatprep.subr.bf16.mxu0 %v1159
        %1257 = vmatpush1.bf16.msra.mxu0 %v1158
        %1258 = vmatprep.subr.bf16.mxu0 %v1167
        %1259 = vmatpush1.bf16.msra.mxu0 %v1166
        %1260 = vmatprep.subr.bf16.mxu0 %v1175
        %1261 = vmatpush1.bf16.msra.mxu0 %v1174
        %1262 = vmatprep.subr.bf16.mxu0 0
        %1263 = vmatpush1.bf16.msra.mxu0 0
        %1264 = vmatprep.subr.bf16.mxu0 0
        %1265 = vmatpush1.bf16.msra.mxu0 0
        %1266 = vmatprep.subr.bf16.mxu0 0
        %1267 = vmatpush1.bf16.msra.mxu0 0
        %1268 = vmatprep.subr.bf16.mxu0 0
        %1269 = vmatpush1.bf16.msra.mxu0 0
        %1270 = vmatprep.subr.bf16.mxu0 0
        %1271 = vmatpush1.bf16.msra.mxu0 0
        %1272 = vmatprep.subr.bf16.mxu0 0
        %1273 = vmatpush1.bf16.msra.mxu0 0
        %1274 = vmatprep.subr.bf16.mxu0 0
        %1275 = vmatpush1.bf16.msra.mxu0 0
        %1276 = vmatprep.subr.bf16.mxu0 0
        %1277 = vmatpush1.bf16.msra.mxu0 0
        %1278 = vmatprep.mubr.bf16.mxu0 0
        %1279 = vmatmul.mubr.bf16.gmra.mrb[0].mxu0 %v812
        %v1280 = vpop.f32.mrb[0].mxu0
        %v1281 = vadd.f32 %v889, %v1280
        %v1282 = vpop.f32.mrb[0].mxu0
        %v1283 = vadd.f32 %v893, %v1282
        %v1284 = vpop.f32.mrb[0].mxu0
        %v1285 = vadd.f32 %v889, %v1284
        %v1286 = vpop.f32.mrb[0].mxu0
        %v1287 = vadd.f32 %v893, %v1286
        %1288 = vmatprep.mubr.bf16.mxu0 0
        %1289 = vmatmul.mubr.bf16.gmra.mrb[0].mxu0 %v813
        %v1290 = vpop.f32.mrb[0].mxu0
        %v1291 = vadd.f32 %v889, %v1290
        %v1292 = vpop.f32.mrb[0].mxu0
        %v1293 = vadd.f32 %v893, %v1292
        %v1294 = vpop.f32.mrb[0].mxu0
        %v1295 = vadd.f32 %v889, %v1294
        %v1296 = vpop.f32.mrb[0].mxu0
        %v1297 = vadd.f32 %v893, %v1296
        %1298 = vmatprep.mubr.bf16.mxu0 0
        %1299 = vmatmul.mubr.bf16.gmra.mrb[0].mxu0 %v814
        %v1300 = vpop.f32.mrb[0].mxu0
        %v1301 = vadd.f32 %v889, %v1300
        %v1302 = vpop.f32.mrb[0].mxu0
        %v1303 = vadd.f32 %v893, %v1302
        %v1304 = vpop.f32.mrb[0].mxu0
        %v1305 = vadd.f32 %v889, %v1304
        %v1306 = vpop.f32.mrb[0].mxu0
        %v1307 = vadd.f32 %v893, %v1306
        %1308 = vmatprep.mubr.bf16.mxu0 0
        %1309 = vmatmul.mubr.bf16.gmra.mrb[0].mxu0 %v815
        %v1310 = vpop.f32.mrb[0].mxu0
        %v1311 = vadd.f32 %v889, %v1310
        %v1312 = vpop.f32.mrb[0].mxu0
        %v1313 = vadd.f32 %v893, %v1312
        %v1314 = vpop.f32.mrb[0].mxu0
        %v1315 = vadd.f32 %v889, %v1314
        %v1316 = vpop.f32.mrb[0].mxu0
        %v1317 = vadd.f32 %v893, %v1316
        %1318 = vmatprep.mubr.bf16.mxu0 0
        %1319 = vmatmul.mubr.bf16.gmra.mrb[0].mxu0 %v816
        %v1320 = vpop.f32.mrb[0].mxu0
        %v1321 = vadd.f32 %v889, %v1320
        %v1322 = vpop.f32.mrb[0].mxu0
        %v1323 = vadd.f32 %v893, %v1322
        %v1324 = vpop.f32.mrb[0].mxu0
        %v1325 = vadd.f32 %v889, %v1324
        %v1326 = vpop.f32.mrb[0].mxu0
        %v1327 = vadd.f32 %v893, %v1326
        %1328 = vmatprep.mubr.bf16.mxu0 0
        %1329 = vmatmul.mubr.bf16.gmra.mrb[0].mxu0 %v817
        %v1330 = vpop.f32.mrb[0].mxu0
        %v1331 = vadd.f32 %v889, %v1330
        %v1332 = vpop.f32.mrb[0].mxu0
        %v1333 = vadd.f32 %v893, %v1332
        %v1334 = vpop.f32.mrb[0].mxu0
        %v1335 = vadd.f32 %v889, %v1334
        %v1336 = vpop.f32.mrb[0].mxu0
        %v1337 = vadd.f32 %v893, %v1336
        %1338 = vmatprep.mubr.bf16.mxu0 0
        %1339 = vmatmul.mubr.bf16.gmra.mrb[0].mxu0 %v818
        %v1340 = vpop.f32.mrb[0].mxu0
        %v1341 = vadd.f32 %v889, %v1340
        %v1342 = vpop.f32.mrb[0].mxu0
        %v1343 = vadd.f32 %v893, %v1342
        %v1344 = vpop.f32.mrb[0].mxu0
        %v1345 = vadd.f32 %v889, %v1344
        %v1346 = vpop.f32.mrb[0].mxu0
        %v1347 = vadd.f32 %v893, %v1346
        %1348 = vmatprep.mubr.bf16.mxu0 0
        %1349 = vmatmul.mubr.bf16.gmra.mrb[0].mxu0 %v819
        %v1350 = vpop.f32.mrb[0].mxu0
        %v1351 = vadd.f32 %v889, %v1350
        %v1352 = vpop.f32.mrb[0].mxu0
        %v1353 = vadd.f32 %v893, %v1352
        %v1354 = vpop.f32.mrb[0].mxu0
        %v1355 = vadd.f32 %v889, %v1354
        %v1356 = vpop.f32.mrb[0].mxu0
        %v1357 = vadd.f32 %v893, %v1356
        %1358 = vdwg.mxu0
        %1359 = vmatprep.subr.bf16.mxu0 %v1121
        %1360 = vmatpush1.bf16.msra.mxu0 %v1120
        %1361 = vmatprep.subr.bf16.mxu0 %v1129
        %1362 = vmatpush1.bf16.msra.mxu0 %v1128
        %1363 = vmatprep.subr.bf16.mxu0 %v1137
        %1364 = vmatpush1.bf16.msra.mxu0 %v1136
        %1365 = vmatprep.subr.bf16.mxu0 %v1145
        %1366 = vmatpush1.bf16.msra.mxu0 %v1144
        %1367 = vmatprep.subr.bf16.mxu0 %v1153
        %1368 = vmatpush1.bf16.msra.mxu0 %v1152
        %1369 = vmatprep.subr.bf16.mxu0 %v1161
        %1370 = vmatpush1.bf16.msra.mxu0 %v1160
        %1371 = vmatprep.subr.bf16.mxu0 %v1169
        %1372 = vmatpush1.bf16.msra.mxu0 %v1168
        %1373 = vmatprep.subr.bf16.mxu0 %v1177
        %1374 = vmatpush1.bf16.msra.mxu0 %v1176
        %1375 = vmatprep.subr.bf16.mxu0 0
        %1376 = vmatpush1.bf16.msra.mxu0 0
        %1377 = vmatprep.subr.bf16.mxu0 0
        %1378 = vmatpush1.bf16.msra.mxu0 0
        %1379 = vmatprep.subr.bf16.mxu0 0
        %1380 = vmatpush1.bf16.msra.mxu0 0
        %1381 = vmatprep.subr.bf16.mxu0 0
        %1382 = vmatpush1.bf16.msra.mxu0 0
        %1383 = vmatprep.subr.bf16.mxu0 0
        %1384 = vmatpush1.bf16.msra.mxu0 0
        %1385 = vmatprep.subr.bf16.mxu0 0
        %1386 = vmatpush1.bf16.msra.mxu0 0
        %1387 = vmatprep.subr.bf16.mxu0 0
        %1388 = vmatpush1.bf16.msra.mxu0 0
        %1389 = vmatprep.subr.bf16.mxu0 0
        %1390 = vmatpush1.bf16.msra.mxu0 0
        %1391 = vmatprep.mubr.bf16.mxu0 0
        %1392 = vmatmul.mubr.bf16.gmra.mrb[0].mxu0 %v812
        %v1393 = vpop.f32.mrb[0].mxu0
        %v1394 = vadd.f32 %v897, %v1393
        %v1395 = vpop.f32.mrb[0].mxu0
        %v1396 = vadd.f32 %v901, %v1395
        %v1397 = vpop.f32.mrb[0].mxu0
        %v1398 = vadd.f32 %v897, %v1397
        %v1399 = vpop.f32.mrb[0].mxu0
        %v1400 = vadd.f32 %v901, %v1399
        %1401 = vmatprep.mubr.bf16.mxu0 0
        %1402 = vmatmul.mubr.bf16.gmra.mrb[0].mxu0 %v813
        %v1403 = vpop.f32.mrb[0].mxu0
        %v1404 = vadd.f32 %v897, %v1403
        %v1405 = vpop.f32.mrb[0].mxu0
        %v1406 = vadd.f32 %v901, %v1405
        %v1407 = vpop.f32.mrb[0].mxu0
        %v1408 = vadd.f32 %v897, %v1407
        %v1409 = vpop.f32.mrb[0].mxu0
        %v1410 = vadd.f32 %v901, %v1409
        %1411 = vmatprep.mubr.bf16.mxu0 0
        %1412 = vmatmul.mubr.bf16.gmra.mrb[0].mxu0 %v814
        %v1413 = vpop.f32.mrb[0].mxu0
        %v1414 = vadd.f32 %v897, %v1413
        %v1415 = vpop.f32.mrb[0].mxu0
        %v1416 = vadd.f32 %v901, %v1415
        %v1417 = vpop.f32.mrb[0].mxu0
        %v1418 = vadd.f32 %v897, %v1417
        %v1419 = vpop.f32.mrb[0].mxu0
        %v1420 = vadd.f32 %v901, %v1419
        %1421 = vmatprep.mubr.bf16.mxu0 0
        %1422 = vmatmul.mubr.bf16.gmra.mrb[0].mxu0 %v815
        %v1423 = vpop.f32.mrb[0].mxu0
        %v1424 = vadd.f32 %v897, %v1423
        %v1425 = vpop.f32.mrb[0].mxu0
        %v1426 = vadd.f32 %v901, %v1425
        %v1427 = vpop.f32.mrb[0].mxu0
        %v1428 = vadd.f32 %v897, %v1427
        %v1429 = vpop.f32.mrb[0].mxu0
        %v1430 = vadd.f32 %v901, %v1429
        %1431 = vmatprep.mubr.bf16.mxu0 0
        %1432 = vmatmul.mubr.bf16.gmra.mrb[0].mxu0 %v816
        %v1433 = vpop.f32.mrb[0].mxu0
        %v1434 = vadd.f32 %v897, %v1433
        %v1435 = vpop.f32.mrb[0].mxu0
        %v1436 = vadd.f32 %v901, %v1435
        %v1437 = vpop.f32.mrb[0].mxu0
        %v1438 = vadd.f32 %v897, %v1437
        %v1439 = vpop.f32.mrb[0].mxu0
        %v1440 = vadd.f32 %v901, %v1439
        %1441 = vmatprep.mubr.bf16.mxu0 0
        %1442 = vmatmul.mubr.bf16.gmra.mrb[0].mxu0 %v817
        %v1443 = vpop.f32.mrb[0].mxu0
        %v1444 = vadd.f32 %v897, %v1443
        %v1445 = vpop.f32.mrb[0].mxu0
        %v1446 = vadd.f32 %v901, %v1445
        %v1447 = vpop.f32.mrb[0].mxu0
        %v1448 = vadd.f32 %v897, %v1447
        %v1449 = vpop.f32.mrb[0].mxu0
        %v1450 = vadd.f32 %v901, %v1449
        %1451 = vmatprep.mubr.bf16.mxu0 0
        %1452 = vmatmul.mubr.bf16.gmra.mrb[0].mxu0 %v818
        %v1453 = vpop.f32.mrb[0].mxu0
        %v1454 = vadd.f32 %v897, %v1453
        %v1455 = vpop.f32.mrb[0].mxu0
        %v1456 = vadd.f32 %v901, %v1455
        %v1457 = vpop.f32.mrb[0].mxu0
        %v1458 = vadd.f32 %v897, %v1457
        %v1459 = vpop.f32.mrb[0].mxu0
        %v1460 = vadd.f32 %v901, %v1459
        %1461 = vmatprep.mubr.bf16.mxu0 0
        %1462 = vmatmul.mubr.bf16.gmra.mrb[0].mxu0 %v819
        %v1463 = vpop.f32.mrb[0].mxu0
        %v1464 = vadd.f32 %v897, %v1463
        %v1465 = vpop.f32.mrb[0].mxu0
        %v1466 = vadd.f32 %v901, %v1465
        %v1467 = vpop.f32.mrb[0].mxu0
        %v1468 = vadd.f32 %v897, %v1467
        %v1469 = vpop.f32.mrb[0].mxu0
        %v1470 = vadd.f32 %v901, %v1469
        %1471 = vdwg.mxu0
        %1472 = vmatprep.subr.bf16.mxu0 %v1123
        %1473 = vmatpush1.bf16.msra.mxu0 %v1122
        %1474 = vmatprep.subr.bf16.mxu0 %v1131
        %1475 = vmatpush1.bf16.msra.mxu0 %v1130
        %1476 = vmatprep.subr.bf16.mxu0 %v1139
        %1477 = vmatpush1.bf16.msra.mxu0 %v1138
        %1478 = vmatprep.subr.bf16.mxu0 %v1147
        %1479 = vmatpush1.bf16.msra.mxu0 %v1146
        %1480 = vmatprep.subr.bf16.mxu0 %v1155
        %1481 = vmatpush1.bf16.msra.mxu0 %v1154
        %1482 = vmatprep.subr.bf16.mxu0 %v1163
        %1483 = vmatpush1.bf16.msra.mxu0 %v1162
        %1484 = vmatprep.subr.bf16.mxu0 %v1171
        %1485 = vmatpush1.bf16.msra.mxu0 %v1170
        %1486 = vmatprep.subr.bf16.mxu0 %v1179
        %1487 = vmatpush1.bf16.msra.mxu0 %v1178
        %1488 = vmatprep.subr.bf16.mxu0 0
        %1489 = vmatpush1.bf16.msra.mxu0 0
        %1490 = vmatprep.subr.bf16.mxu0 0
        %1491 = vmatpush1.bf16.msra.mxu0 0
        %1492 = vmatprep.subr.bf16.mxu0 0
        %1493 = vmatpush1.bf16.msra.mxu0 0
        %1494 = vmatprep.subr.bf16.mxu0 0
        %1495 = vmatpush1.bf16.msra.mxu0 0
        %1496 = vmatprep.subr.bf16.mxu0 0
        %1497 = vmatpush1.bf16.msra.mxu0 0
        %1498 = vmatprep.subr.bf16.mxu0 0
        %1499 = vmatpush1.bf16.msra.mxu0 0
        %1500 = vmatprep.subr.bf16.mxu0 0
        %1501 = vmatpush1.bf16.msra.mxu0 0
        %1502 = vmatprep.subr.bf16.mxu0 0
        %1503 = vmatpush1.bf16.msra.mxu0 0
        %1504 = vmatprep.mubr.bf16.mxu0 0
        %1505 = vmatmul.mubr.bf16.gmra.mrb[0].mxu0 %v812
        %v1506 = vpop.f32.mrb[0].mxu0
        %v1507 = vadd.f32 %v905, %v1506
        %v1508 = vpop.f32.mrb[0].mxu0
        %v1509 = vadd.f32 %v909, %v1508
        %v1510 = vpop.f32.mrb[0].mxu0
        %v1511 = vadd.f32 %v905, %v1510
        %v1512 = vpop.f32.mrb[0].mxu0
        %v1513 = vadd.f32 %v909, %v1512
        %1514 = vmatprep.mubr.bf16.mxu0 0
        %1515 = vmatmul.mubr.bf16.gmra.mrb[0].mxu0 %v813
        %v1516 = vpop.f32.mrb[0].mxu0
        %v1517 = vadd.f32 %v905, %v1516
        %v1518 = vpop.f32.mrb[0].mxu0
        %v1519 = vadd.f32 %v909, %v1518
        %v1520 = vpop.f32.mrb[0].mxu0
        %v1521 = vadd.f32 %v905, %v1520
        %v1522 = vpop.f32.mrb[0].mxu0
        %v1523 = vadd.f32 %v909, %v1522
        %1524 = vmatprep.mubr.bf16.mxu0 0
        %1525 = vmatmul.mubr.bf16.gmra.mrb[0].mxu0 %v814
        %v1526 = vpop.f32.mrb[0].mxu0
        %v1527 = vadd.f32 %v905, %v1526
        %v1528 = vpop.f32.mrb[0].mxu0
        %v1529 = vadd.f32 %v909, %v1528
        %v1530 = vpop.f32.mrb[0].mxu0
        %v1531 = vadd.f32 %v905, %v1530
        %v1532 = vpop.f32.mrb[0].mxu0
        %v1533 = vadd.f32 %v909, %v1532
        %1534 = vmatprep.mubr.bf16.mxu0 0
        %1535 = vmatmul.mubr.bf16.gmra.mrb[0].mxu0 %v815
        %v1536 = vpop.f32.mrb[0].mxu0
        %v1537 = vadd.f32 %v905, %v1536
        %v1538 = vpop.f32.mrb[0].mxu0
        %v1539 = vadd.f32 %v909, %v1538
        %v1540 = vpop.f32.mrb[0].mxu0
        %v1541 = vadd.f32 %v905, %v1540
        %v1542 = vpop.f32.mrb[0].mxu0
        %v1543 = vadd.f32 %v909, %v1542
        %1544 = vmatprep.mubr.bf16.mxu0 0
        %1545 = vmatmul.mubr.bf16.gmra.mrb[0].mxu0 %v816
        %v1546 = vpop.f32.mrb[0].mxu0
        %v1547 = vadd.f32 %v905, %v1546
        %v1548 = vpop.f32.mrb[0].mxu0
        %v1549 = vadd.f32 %v909, %v1548
        %v1550 = vpop.f32.mrb[0].mxu0
        %v1551 = vadd.f32 %v905, %v1550
        %v1552 = vpop.f32.mrb[0].mxu0
        %v1553 = vadd.f32 %v909, %v1552
        %1554 = vmatprep.mubr.bf16.mxu0 0
        %1555 = vmatmul.mubr.bf16.gmra.mrb[0].mxu0 %v817
        %v1556 = vpop.f32.mrb[0].mxu0
        %v1557 = vadd.f32 %v905, %v1556
        %v1558 = vpop.f32.mrb[0].mxu0
        %v1559 = vadd.f32 %v909, %v1558
        %v1560 = vpop.f32.mrb[0].mxu0
        %v1561 = vadd.f32 %v905, %v1560
        %v1562 = vpop.f32.mrb[0].mxu0
        %v1563 = vadd.f32 %v909, %v1562
        %1564 = vmatprep.mubr.bf16.mxu0 0
        %1565 = vmatmul.mubr.bf16.gmra.mrb[0].mxu0 %v818
        %v1566 = vpop.f32.mrb[0].mxu0
        %v1567 = vadd.f32 %v905, %v1566
        %v1568 = vpop.f32.mrb[0].mxu0
        %v1569 = vadd.f32 %v909, %v1568
        %v1570 = vpop.f32.mrb[0].mxu0
        %v1571 = vadd.f32 %v905, %v1570
        %v1572 = vpop.f32.mrb[0].mxu0
        %v1573 = vadd.f32 %v909, %v1572
        %1574 = vmatprep.mubr.bf16.mxu0 0
        %1575 = vmatmul.mubr.bf16.gmra.mrb[0].mxu0 %v819
        %v1576 = vpop.f32.mrb[0].mxu0
        %v1577 = vadd.f32 %v905, %v1576
        %v1578 = vpop.f32.mrb[0].mxu0
        %v1579 = vadd.f32 %v909, %v1578
        %v1580 = vpop.f32.mrb[0].mxu0
        %v1581 = vadd.f32 %v905, %v1580
        %v1582 = vpop.f32.mrb[0].mxu0
        %v1583 = vadd.f32 %v909, %v1582
        %1584 = vdwg.mxu0
        %1585 = vmatprep.subr.bf16.mxu0 %v1125
        %1586 = vmatpush1.bf16.msra.mxu0 %v1124
        %1587 = vmatprep.subr.bf16.mxu0 %v1133
        %1588 = vmatpush1.bf16.msra.mxu0 %v1132
        %1589 = vmatprep.subr.bf16.mxu0 %v1141
        %1590 = vmatpush1.bf16.msra.mxu0 %v1140
        %1591 = vmatprep.subr.bf16.mxu0 %v1149
        %1592 = vmatpush1.bf16.msra.mxu0 %v1148
        %1593 = vmatprep.subr.bf16.mxu0 %v1157
        %1594 = vmatpush1.bf16.msra.mxu0 %v1156
        %1595 = vmatprep.subr.bf16.mxu0 %v1165
        %1596 = vmatpush1.bf16.msra.mxu0 %v1164
        %1597 = vmatprep.subr.bf16.mxu0 %v1173
        %1598 = vmatpush1.bf16.msra.mxu0 %v1172
        %1599 = vmatprep.subr.bf16.mxu0 %v1181
        %1600 = vmatpush1.bf16.msra.mxu0 %v1180
        %1601 = vmatprep.subr.bf16.mxu0 0
        %1602 = vmatpush1.bf16.msra.mxu0 0
        %1603 = vmatprep.subr.bf16.mxu0 0
        %1604 = vmatpush1.bf16.msra.mxu0 0
        %1605 = vmatprep.subr.bf16.mxu0 0
        %1606 = vmatpush1.bf16.msra.mxu0 0
        %1607 = vmatprep.subr.bf16.mxu0 0
        %1608 = vmatpush1.bf16.msra.mxu0 0
        %1609 = vmatprep.subr.bf16.mxu0 0
        %1610 = vmatpush1.bf16.msra.mxu0 0
        %1611 = vmatprep.subr.bf16.mxu0 0
        %1612 = vmatpush1.bf16.msra.mxu0 0
        %1613 = vmatprep.subr.bf16.mxu0 0
        %1614 = vmatpush1.bf16.msra.mxu0 0
        %1615 = vmatprep.subr.bf16.mxu0 0
        %1616 = vmatpush1.bf16.msra.mxu0 0
        %1617 = vmatprep.mubr.bf16.mxu0 0
        %1618 = vmatmul.mubr.bf16.gmra.mrb[0].mxu0 %v812
        %v1619 = vpop.f32.mrb[0].mxu0
        %v1620 = vadd.f32 %v913, %v1619
        %v1621 = vpop.f32.mrb[0].mxu0
        %v1622 = vadd.f32 %v917, %v1621
        %v1623 = vpop.f32.mrb[0].mxu0
        %v1624 = vadd.f32 %v913, %v1623
        %v1625 = vpop.f32.mrb[0].mxu0
        %v1626 = vadd.f32 %v917, %v1625
        %1627 = vmatprep.mubr.bf16.mxu0 0
        %1628 = vmatmul.mubr.bf16.gmra.mrb[0].mxu0 %v813
        %v1629 = vpop.f32.mrb[0].mxu0
        %v1630 = vadd.f32 %v913, %v1629
        %v1631 = vpop.f32.mrb[0].mxu0
        %v1632 = vadd.f32 %v917, %v1631
        %v1633 = vpop.f32.mrb[0].mxu0
        %v1634 = vadd.f32 %v913, %v1633
        %v1635 = vpop.f32.mrb[0].mxu0
        %v1636 = vadd.f32 %v917, %v1635
        %1637 = vmatprep.mubr.bf16.mxu0 0
        %1638 = vmatmul.mubr.bf16.gmra.mrb[0].mxu0 %v814
        %v1639 = vpop.f32.mrb[0].mxu0
        %v1640 = vadd.f32 %v913, %v1639
        %v1641 = vpop.f32.mrb[0].mxu0
        %v1642 = vadd.f32 %v917, %v1641
        %v1643 = vpop.f32.mrb[0].mxu0
        %v1644 = vadd.f32 %v913, %v1643
        %v1645 = vpop.f32.mrb[0].mxu0
        %v1646 = vadd.f32 %v917, %v1645
        %1647 = vmatprep.mubr.bf16.mxu0 0
        %1648 = vmatmul.mubr.bf16.gmra.mrb[0].mxu0 %v815
        %v1649 = vpop.f32.mrb[0].mxu0
        %v1650 = vadd.f32 %v913, %v1649
        %v1651 = vpop.f32.mrb[0].mxu0
        %v1652 = vadd.f32 %v917, %v1651
        %v1653 = vpop.f32.mrb[0].mxu0
        %v1654 = vadd.f32 %v913, %v1653
        %v1655 = vpop.f32.mrb[0].mxu0
        %v1656 = vadd.f32 %v917, %v1655
        %1657 = vmatprep.mubr.bf16.mxu0 0
        %1658 = vmatmul.mubr.bf16.gmra.mrb[0].mxu0 %v816
        %v1659 = vpop.f32.mrb[0].mxu0
        %v1660 = vadd.f32 %v913, %v1659
        %v1661 = vpop.f32.mrb[0].mxu0
        %v1662 = vadd.f32 %v917, %v1661
        %v1663 = vpop.f32.mrb[0].mxu0
        %v1664 = vadd.f32 %v913, %v1663
        %v1665 = vpop.f32.mrb[0].mxu0
        %v1666 = vadd.f32 %v917, %v1665
        %1667 = vmatprep.mubr.bf16.mxu0 0
        %1668 = vmatmul.mubr.bf16.gmra.mrb[0].mxu0 %v817
        %v1669 = vpop.f32.mrb[0].mxu0
        %v1670 = vadd.f32 %v913, %v1669
        %v1671 = vpop.f32.mrb[0].mxu0
        %v1672 = vadd.f32 %v917, %v1671
        %v1673 = vpop.f32.mrb[0].mxu0
        %v1674 = vadd.f32 %v913, %v1673
        %v1675 = vpop.f32.mrb[0].mxu0
        %v1676 = vadd.f32 %v917, %v1675
        %1677 = vmatprep.mubr.bf16.mxu0 0
        %1678 = vmatmul.mubr.bf16.gmra.mrb[0].mxu0 %v818
        %v1679 = vpop.f32.mrb[0].mxu0
        %v1680 = vadd.f32 %v913, %v1679
        %v1681 = vpop.f32.mrb[0].mxu0
        %v1682 = vadd.f32 %v917, %v1681
        %v1683 = vpop.f32.mrb[0].mxu0
        %v1684 = vadd.f32 %v913, %v1683
        %v1685 = vpop.f32.mrb[0].mxu0
        %v1686 = vadd.f32 %v917, %v1685
        %1687 = vmatprep.mubr.bf16.mxu0 0
        %1688 = vmatmul.mubr.bf16.gmra.mrb[0].mxu0 %v819
        %v1689 = vpop.f32.mrb[0].mxu0
        %v1690 = vadd.f32 %v913, %v1689
        %v1691 = vpop.f32.mrb[0].mxu0
        %v1692 = vadd.f32 %v917, %v1691
        %v1693 = vpop.f32.mrb[0].mxu0
        %v1694 = vadd.f32 %v913, %v1693
        %v1695 = vpop.f32.mrb[0].mxu0
        %v1696 = vadd.f32 %v917, %v1695
        %1697 = vdwg.mxu0
        %v1698 = vmax.f32 %v1281, 0.0
        %v1699 = vmax.f32 %v1283, 0.0
        %v1700 = vmax.f32 %v1394, 0.0
        %v1701 = vmax.f32 %v1396, 0.0
        %v1702 = vmax.f32 %v1507, 0.0
        %v1703 = vmax.f32 %v1509, 0.0
        %v1704 = vmax.f32 %v1620, 0.0
        %v1705 = vmax.f32 %v1622, 0.0
        %v1706 = vmax.f32 %v1285, 0.0
        %v1707 = vmax.f32 %v1287, 0.0
        %v1708 = vmax.f32 %v1398, 0.0
        %v1709 = vmax.f32 %v1400, 0.0
        %v1710 = vmax.f32 %v1511, 0.0
        %v1711 = vmax.f32 %v1513, 0.0
        %v1712 = vmax.f32 %v1624, 0.0
        %v1713 = vmax.f32 %v1626, 0.0
        %v1714 = vmax.f32 %v1291, 0.0
        %v1715 = vmax.f32 %v1293, 0.0
        %v1716 = vmax.f32 %v1404, 0.0
        %v1717 = vmax.f32 %v1406, 0.0
        %v1718 = vmax.f32 %v1517, 0.0
        %v1719 = vmax.f32 %v1519, 0.0
        %v1720 = vmax.f32 %v1630, 0.0
        %v1721 = vmax.f32 %v1632, 0.0
        %v1722 = vmax.f32 %v1295, 0.0
        %v1723 = vmax.f32 %v1297, 0.0
        %v1724 = vmax.f32 %v1408, 0.0
        %v1725 = vmax.f32 %v1410, 0.0
        %v1726 = vmax.f32 %v1521, 0.0
        %v1727 = vmax.f32 %v1523, 0.0
        %v1728 = vmax.f32 %v1634, 0.0
        %v1729 = vmax.f32 %v1636, 0.0
        %v1730 = vmax.f32 %v1301, 0.0
        %v1731 = vmax.f32 %v1303, 0.0
        %v1732 = vmax.f32 %v1414, 0.0
        %v1733 = vmax.f32 %v1416, 0.0
        %v1734 = vmax.f32 %v1527, 0.0
        %v1735 = vmax.f32 %v1529, 0.0
        %v1736 = vmax.f32 %v1640, 0.0
        %v1737 = vmax.f32 %v1642, 0.0
        %v1738 = vmax.f32 %v1305, 0.0
        %v1739 = vmax.f32 %v1307, 0.0
        %v1740 = vmax.f32 %v1418, 0.0
        %v1741 = vmax.f32 %v1420, 0.0
        %v1742 = vmax.f32 %v1531, 0.0
        %v1743 = vmax.f32 %v1533, 0.0
        %v1744 = vmax.f32 %v1644, 0.0
        %v1745 = vmax.f32 %v1646, 0.0
        %v1746 = vmax.f32 %v1311, 0.0
        %v1747 = vmax.f32 %v1313, 0.0
        %v1748 = vmax.f32 %v1424, 0.0
        %v1749 = vmax.f32 %v1426, 0.0
        %v1750 = vmax.f32 %v1537, 0.0
        %v1751 = vmax.f32 %v1539, 0.0
        %v1752 = vmax.f32 %v1650, 0.0
        %v1753 = vmax.f32 %v1652, 0.0
        %v1754 = vmax.f32 %v1315, 0.0
        %v1755 = vmax.f32 %v1317, 0.0
        %v1756 = vmax.f32 %v1428, 0.0
        %v1757 = vmax.f32 %v1430, 0.0
        %v1758 = vmax.f32 %v1541, 0.0
        %v1759 = vmax.f32 %v1543, 0.0
        %v1760 = vmax.f32 %v1654, 0.0
        %v1761 = vmax.f32 %v1656, 0.0
        %v1762 = vmax.f32 %v1321, 0.0
        %v1763 = vmax.f32 %v1323, 0.0
        %v1764 = vmax.f32 %v1434, 0.0
        %v1765 = vmax.f32 %v1436, 0.0
        %v1766 = vmax.f32 %v1547, 0.0
        %v1767 = vmax.f32 %v1549, 0.0
        %v1768 = vmax.f32 %v1660, 0.0
        %v1769 = vmax.f32 %v1662, 0.0
        %v1770 = vmax.f32 %v1325, 0.0
        %v1771 = vmax.f32 %v1327, 0.0
        %v1772 = vmax.f32 %v1438, 0.0
        %v1773 = vmax.f32 %v1440, 0.0
        %v1774 = vmax.f32 %v1551, 0.0
        %v1775 = vmax.f32 %v1553, 0.0
        %v1776 = vmax.f32 %v1664, 0.0
        %v1777 = vmax.f32 %v1666, 0.0
        %v1778 = vmax.f32 %v1331, 0.0
        %v1779 = vmax.f32 %v1333, 0.0
        %v1780 = vmax.f32 %v1444, 0.0
        %v1781 = vmax.f32 %v1446, 0.0
        %v1782 = vmax.f32 %v1557, 0.0
        %v1783 = vmax.f32 %v1559, 0.0
        %v1784 = vmax.f32 %v1670, 0.0
        %v1785 = vmax.f32 %v1672, 0.0
        %v1786 = vmax.f32 %v1335, 0.0
        %v1787 = vmax.f32 %v1337, 0.0
        %v1788 = vmax.f32 %v1448, 0.0
        %v1789 = vmax.f32 %v1450, 0.0
        %v1790 = vmax.f32 %v1561, 0.0
        %v1791 = vmax.f32 %v1563, 0.0
        %v1792 = vmax.f32 %v1674, 0.0
        %v1793 = vmax.f32 %v1676, 0.0
        %v1794 = vmax.f32 %v1341, 0.0
        %v1795 = vmax.f32 %v1343, 0.0
        %v1796 = vmax.f32 %v1454, 0.0
        %v1797 = vmax.f32 %v1456, 0.0
        %v1798 = vmax.f32 %v1567, 0.0
        %v1799 = vmax.f32 %v1569, 0.0
        %v1800 = vmax.f32 %v1680, 0.0
        %v1801 = vmax.f32 %v1682, 0.0
        %v1802 = vmax.f32 %v1345, 0.0
        %v1803 = vmax.f32 %v1347, 0.0
        %v1804 = vmax.f32 %v1458, 0.0
        %v1805 = vmax.f32 %v1460, 0.0
        %v1806 = vmax.f32 %v1571, 0.0
        %v1807 = vmax.f32 %v1573, 0.0
        %v1808 = vmax.f32 %v1684, 0.0
        %v1809 = vmax.f32 %v1686, 0.0
        %v1810 = vmax.f32 %v1351, 0.0
        %v1811 = vmax.f32 %v1353, 0.0
        %v1812 = vmax.f32 %v1464, 0.0
        %v1813 = vmax.f32 %v1466, 0.0
        %v1814 = vmax.f32 %v1577, 0.0
        %v1815 = vmax.f32 %v1579, 0.0
        %v1816 = vmax.f32 %v1690, 0.0
        %v1817 = vmax.f32 %v1692, 0.0
        %v1818 = vmax.f32 %v1355, 0.0
        %v1819 = vmax.f32 %v1357, 0.0
        %v1820 = vmax.f32 %v1468, 0.0
        %v1821 = vmax.f32 %v1470, 0.0
        %v1822 = vmax.f32 %v1581, 0.0
        %v1823 = vmax.f32 %v1583, 0.0
        %v1824 = vmax.f32 %v1694, 0.0
        %v1825 = vmax.f32 %v1696, 0.0
        %v1826 = vld [vmem:[#allocation2] sm:$0xff]
        %v1827 = vld [vmem:[#allocation2 + $0x8] sm:$0xff]
        %v1828 = vld [vmem:[#allocation2 + $0x10] sm:$0xff]
        %v1829 = vld [vmem:[#allocation2 + $0x18] sm:$0xff]
        %v1830 = vld [vmem:[#allocation2 + $0x20] sm:$0xff]
        %v1831 = vld [vmem:[#allocation2 + $0x28] sm:$0xff]
        %v1832 = vld [vmem:[#allocation2 + $0x30] sm:$0xff]
        %v1833 = vld [vmem:[#allocation2 + $0x38] sm:$0xff]
        %v1834 = vmax.f32 %v1698, %v1706
        %v1835 = vmax.f32 %v1834, %v1714
        %v1836 = vmax.f32 %v1835, %v1722
        %v1837 = vmax.f32 %v1836, %v1730
        %v1838 = vmax.f32 %v1837, %v1738
        %v1839 = vmax.f32 %v1838, %v1746
        %v1840 = vmax.f32 %v1839, %v1754
        %v1841 = vmax.f32 %v1840, %v1762
        %v1842 = vmax.f32 %v1841, %v1770
        %v1843 = vmax.f32 %v1842, %v1778
        %v1844 = vmax.f32 %v1843, %v1786
        %v1845 = vmax.f32 %v1844, %v1794
        %v1846 = vmax.f32 %v1845, %v1802
        %v1847 = vmax.f32 %v1846, %v1810
        %v1848 = vmax.f32 %v1847, %v1818
        %v1849 = vmax.f32 %v1699, %v1707
        %v1850 = vmax.f32 %v1849, %v1715
        %v1851 = vmax.f32 %v1850, %v1723
        %v1852 = vmax.f32 %v1851, %v1731
        %v1853 = vmax.f32 %v1852, %v1739
        %v1854 = vmax.f32 %v1853, %v1747
        %v1855 = vmax.f32 %v1854, %v1755
        %v1856 = vmax.f32 %v1855, %v1763
        %v1857 = vmax.f32 %v1856, %v1771
        %v1858 = vmax.f32 %v1857, %v1779
        %v1859 = vmax.f32 %v1858, %v1787
        %v1860 = vmax.f32 %v1859, %v1795
        %v1861 = vmax.f32 %v1860, %v1803
        %v1862 = vmax.f32 %v1861, %v1811
        %v1863 = vmax.f32 %v1862, %v1819
        %v1864 = vmax.f32 %v1700, %v1708
        %v1865 = vmax.f32 %v1864, %v1716
        %v1866 = vmax.f32 %v1865, %v1724
        %v1867 = vmax.f32 %v1866, %v1732
        %v1868 = vmax.f32 %v1867, %v1740
        %v1869 = vmax.f32 %v1868, %v1748
        %v1870 = vmax.f32 %v1869, %v1756
        %v1871 = vmax.f32 %v1870, %v1764
        %v1872 = vmax.f32 %v1871, %v1772
        %v1873 = vmax.f32 %v1872, %v1780
        %v1874 = vmax.f32 %v1873, %v1788
        %v1875 = vmax.f32 %v1874, %v1796
        %v1876 = vmax.f32 %v1875, %v1804
        %v1877 = vmax.f32 %v1876, %v1812
        %v1878 = vmax.f32 %v1877, %v1820
        %v1879 = vmax.f32 %v1701, %v1709
        %v1880 = vmax.f32 %v1879, %v1717
        %v1881 = vmax.f32 %v1880, %v1725
        %v1882 = vmax.f32 %v1881, %v1733
        %v1883 = vmax.f32 %v1882, %v1741
        %v1884 = vmax.f32 %v1883, %v1749
        %v1885 = vmax.f32 %v1884, %v1757
        %v1886 = vmax.f32 %v1885, %v1765
        %v1887 = vmax.f32 %v1886, %v1773
        %v1888 = vmax.f32 %v1887, %v1781
        %v1889 = vmax.f32 %v1888, %v1789
        %v1890 = vmax.f32 %v1889, %v1797
        %v1891 = vmax.f32 %v1890, %v1805
        %v1892 = vmax.f32 %v1891, %v1813
        %v1893 = vmax.f32 %v1892, %v1821
        %v1894 = vmax.f32 %v1702, %v1710
        %v1895 = vmax.f32 %v1894, %v1718
        %v1896 = vmax.f32 %v1895, %v1726
        %v1897 = vmax.f32 %v1896, %v1734
        %v1898 = vmax.f32 %v1897, %v1742
        %v1899 = vmax.f32 %v1898, %v1750
        %v1900 = vmax.f32 %v1899, %v1758
        %v1901 = vmax.f32 %v1900, %v1766
        %v1902 = vmax.f32 %v1901, %v1774
        %v1903 = vmax.f32 %v1902, %v1782
        %v1904 = vmax.f32 %v1903, %v1790
        %v1905 = vmax.f32 %v1904, %v1798
        %v1906 = vmax.f32 %v1905, %v1806
        %v1907 = vmax.f32 %v1906, %v1814
        %v1908 = vmax.f32 %v1907, %v1822
        %v1909 = vmax.f32 %v1703, %v1711
        %v1910 = vmax.f32 %v1909, %v1719
        %v1911 = vmax.f32 %v1910, %v1727
        %v1912 = vmax.f32 %v1911, %v1735
        %v1913 = vmax.f32 %v1912, %v1743
        %v1914 = vmax.f32 %v1913, %v1751
        %v1915 = vmax.f32 %v1914, %v1759
        %v1916 = vmax.f32 %v1915, %v1767
        %v1917 = vmax.f32 %v1916, %v1775
        %v1918 = vmax.f32 %v1917, %v1783
        %v1919 = vmax.f32 %v1918, %v1791
        %v1920 = vmax.f32 %v1919, %v1799
        %v1921 = vmax.f32 %v1920, %v1807
        %v1922 = vmax.f32 %v1921, %v1815
        %v1923 = vmax.f32 %v1922, %v1823
        %v1924 = vmax.f32 %v1704, %v1712
        %v1925 = vmax.f32 %v1924, %v1720
        %v1926 = vmax.f32 %v1925, %v1728
        %v1927 = vmax.f32 %v1926, %v1736
        %v1928 = vmax.f32 %v1927, %v1744
        %v1929 = vmax.f32 %v1928, %v1752
        %v1930 = vmax.f32 %v1929, %v1760
        %v1931 = vmax.f32 %v1930, %v1768
        %v1932 = vmax.f32 %v1931, %v1776
        %v1933 = vmax.f32 %v1932, %v1784
        %v1934 = vmax.f32 %v1933, %v1792
        %v1935 = vmax.f32 %v1934, %v1800
        %v1936 = vmax.f32 %v1935, %v1808
        %v1937 = vmax.f32 %v1936, %v1816
        %v1938 = vmax.f32 %v1937, %v1824
        %v1939 = vmax.f32 %v1705, %v1713
        %v1940 = vmax.f32 %v1939, %v1721
        %v1941 = vmax.f32 %v1940, %v1729
        %v1942 = vmax.f32 %v1941, %v1737
        %v1943 = vmax.f32 %v1942, %v1745
        %v1944 = vmax.f32 %v1943, %v1753
        %v1945 = vmax.f32 %v1944, %v1761
        %v1946 = vmax.f32 %v1945, %v1769
        %v1947 = vmax.f32 %v1946, %v1777
        %v1948 = vmax.f32 %v1947, %v1785
        %v1949 = vmax.f32 %v1948, %v1793
        %v1950 = vmax.f32 %v1949, %v1801
        %v1951 = vmax.f32 %v1950, %v1809
        %v1952 = vmax.f32 %v1951, %v1817
        %v1953 = vmax.f32 %v1952, %v1825
        %v1954 = vmax.f32 %v1826, %v1848
        %v1955 = vmax.f32 %v1827, %v1863
        %v1956 = vmax.f32 %v1828, %v1878
        %v1957 = vmax.f32 %v1829, %v1893
        %v1958 = vmax.f32 %v1830, %v1908
        %v1959 = vmax.f32 %v1831, %v1923
        %v1960 = vmax.f32 %v1832, %v1938
        %v1961 = vmax.f32 %v1833, %v1953
        %1962 = vst [vmem:[#allocation2] sm:$0xff] %v1954
        %1963 = vst [vmem:[#allocation2 + $0x8] sm:$0xff] %v1955
        %1964 = vst [vmem:[#allocation2 + $0x10] sm:$0xff] %v1956
        %1965 = vst [vmem:[#allocation2 + $0x18] sm:$0xff] %v1957
        %1966 = vst [vmem:[#allocation2 + $0x20] sm:$0xff] %v1958
        %1967 = vst [vmem:[#allocation2 + $0x28] sm:$0xff] %v1959
        %1968 = vst [vmem:[#allocation2 + $0x30] sm:$0xff] %v1960
        %1969 = vst [vmem:[#allocation2 + $0x38] sm:$0xff] %v1961
        %p1970 = scmp.eq.s32.totalorder %s34, 2
        // Predicated region
        $region81: #{tpu_custom_call.1} parent=47 // pred_check
          %p1971 = pneg %p1970
        $region82: #{tpu_custom_call.1} parent=47 // pred_check_branch
          %1973 = sbr.rel (%p1971) target = $region84
        $region83: #{tpu_custom_call.1} parent=47 // pred_region
          %v1974 = vld [vmem:[#allocation2] sm:$0xff]
          %v1975 = vld [vmem:[#allocation2 + $0x8] sm:$0xff]
          %v1976 = vld [vmem:[#allocation2 + $0x10] sm:$0xff]
          %v1977 = vld [vmem:[#allocation2 + $0x18] sm:$0xff]
          %v1978 = vld [vmem:[#allocation2 + $0x20] sm:$0xff]
          %v1979 = vld [vmem:[#allocation2 + $0x28] sm:$0xff]
          %v1980 = vld [vmem:[#allocation2 + $0x30] sm:$0xff]
          %v1981 = vld [vmem:[#allocation2 + $0x38] sm:$0xff]
          %v1982 = vrot.slane %v1974, 4
          %v1983 = vmax.f32 %v1974, %v1982
          %v1984 = vrot.slane %v1983, 2
          %v1985 = vmax.f32 %v1983, %v1984
          %v1986 = vrot.slane %v1985, 1
          %v1987 = vmax.f32 %v1985, %v1986
          %v1988 = vrot.slane %v1975, 4
          %v1989 = vmax.f32 %v1975, %v1988
          %v1990 = vrot.slane %v1989, 2
          %v1991 = vmax.f32 %v1989, %v1990
          %v1992 = vrot.slane %v1991, 1
          %v1993 = vmax.f32 %v1991, %v1992
          %v1994 = vrot.slane %v1976, 4
          %v1995 = vmax.f32 %v1976, %v1994
          %v1996 = vrot.slane %v1995, 2
          %v1997 = vmax.f32 %v1995, %v1996
          %v1998 = vrot.slane %v1997, 1
          %v1999 = vmax.f32 %v1997, %v1998
          %v2000 = vrot.slane %v1977, 4
          %v2001 = vmax.f32 %v1977, %v2000
          %v2002 = vrot.slane %v2001, 2
          %v2003 = vmax.f32 %v2001, %v2002
          %v2004 = vrot.slane %v2003, 1
          %v2005 = vmax.f32 %v2003, %v2004
          %v2006 = vrot.slane %v1978, 4
          %v2007 = vmax.f32 %v1978, %v2006
          %v2008 = vrot.slane %v2007, 2
          %v2009 = vmax.f32 %v2007, %v2008
          %v2010 = vrot.slane %v2009, 1
          %v2011 = vmax.f32 %v2009, %v2010
          %v2012 = vrot.slane %v1979, 4
          %v2013 = vmax.f32 %v1979, %v2012
          %v2014 = vrot.slane %v2013, 2
          %v2015 = vmax.f32 %v2013, %v2014
          %v2016 = vrot.slane %v2015, 1
          %v2017 = vmax.f32 %v2015, %v2016
          %v2018 = vrot.slane %v1980, 4
          %v2019 = vmax.f32 %v1980, %v2018
          %v2020 = vrot.slane %v2019, 2
          %v2021 = vmax.f32 %v2019, %v2020
          %v2022 = vrot.slane %v2021, 1
          %v2023 = vmax.f32 %v2021, %v2022
          %v2024 = vrot.slane %v1981, 4
          %v2025 = vmax.f32 %v1981, %v2024
          %v2026 = vrot.slane %v2025, 2
          %v2027 = vmax.f32 %v2025, %v2026
          %v2028 = vrot.slane %v2027, 1
          %v2029 = vmax.f32 %v2027, %v2028
          %v2038 = vcombine.low %v1987, %v1993
          %v2039 = vcombine.low %v1999, %v2005
          %v2040 = vcombine.low %v2011, %v2017
          %v2041 = vcombine.low %v2023, %v2029
          %v2043 = vunpack.c.l.s4 1966171168
          %v2044 = vunpack.c.0.s8 %v2043
          %v2045 = vlaneseq
          %v2046 = vshrl.u32 %v2045, 7
          %v2047 = vsub.s32 %v2044, %v2046
          %v2048 = vrot.slane %v2038, %v2047
          %v2050 = vunpack.c.l.s4 1966171168
          %v2051 = vunpack.c.0.s8 %v2050
          %v2052 = vlaneseq
          %v2053 = vshrl.u32 %v2052, 7
          %v2054 = vsub.s32 %v2051, %v2053
          %v2055 = vrot.slane %v2039, %v2054
          %v2057 = vunpack.c.l.s4 1966171168
          %v2058 = vunpack.c.0.s8 %v2057
          %v2059 = vlaneseq
          %v2060 = vshrl.u32 %v2059, 7
          %v2061 = vsub.s32 %v2058, %v2060
          %v2062 = vrot.slane %v2040, %v2061
          %v2064 = vunpack.c.l.s4 1966171168
          %v2065 = vunpack.c.0.s8 %v2064
          %v2066 = vlaneseq
          %v2067 = vshrl.u32 %v2066, 7
          %v2068 = vsub.s32 %v2065, %v2067
          %v2069 = vrot.slane %v2041, %v2068
          %v2070 = vcombine.low %v2048, %v2055
          %v2071 = vcombine.low %v2062, %v2069
          %v2073 = vunpack.c.l.s4 1966171168
          %v2074 = vunpack.c.0.s8 %v2073
          %v2075 = vlaneseq
          %v2076 = vshrl.u32 %v2075, 7
          %v2077 = vsub.s32 %v2074, %v2076
          %v2078 = vrot.slane %v2070, %v2077
          %v2080 = vunpack.c.l.s4 1966171168
          %v2081 = vunpack.c.0.s8 %v2080
          %v2082 = vlaneseq
          %v2083 = vshrl.u32 %v2082, 7
          %v2084 = vsub.s32 %v2081, %v2083
          %v2085 = vrot.slane %v2071, %v2084
          %v2086 = vcombine.low %v2078, %v2085
          %2088 = vst [vmem:[%s407] sm:$0xff] %v2086
        $region84: #{tpu_custom_call.1} parent=47 // pred_fallthru
          _
        %s2089 = sand.u32 %s214, 1
        %s2090 = scalar_lea.sflag [#allocation5], %s2089
        %s2091 = sand.u32 %s214, 1
        %s2092 = smul.addr %s2091, 8
        %s2093 = scalar_lea.vmem [#allocation15], %s2092
        // Predicated region
        $region85: #{tpu_custom_call.1} parent=47 // pred_check
          %p2094 = pneg %p224
        $region86: #{tpu_custom_call.1} parent=47 // pred_check_branch
          %2096 = sbr.rel (%p2094) target = $region88
        $region87: #{tpu_custom_call.1} parent=47 // pred_region
          %s2098 = ssub.s32 128, 128
          %2099 = vsyncadd %s2090, %s2098
          %s2100 = smul.addr %s33, 8
          %s2101 = smul.addr %s32, 16
          %s2102 = sadd.s32 %s2100, %s2101
          %s2103 = smul.addr %s2102, 16
          %s2104 = scalar_lea.hbm %s7, %s2103
          %s2106 = sshll.u32 %s2093, 4
          %s2107 = int_to_ptr.vmem [resolvable:$true] %s2106
          %2109 = dma.vmem_to_hbm [thread:$0]  %s2107, 128, %s2104, %s2090
        $region88: #{tpu_custom_call.1} parent=47 // pred_fallthru
          _
      $region48: #{tpu_custom_call.1} parent=5 // pred_fallthru
        _
      %p2110 = scmp.le.s32.totalorder 2, %s22
      // Predicated region
      $region89: #{tpu_custom_call.1} parent=5 // pred_check
        %p2111 = pneg %p2110
      $region90: #{tpu_custom_call.1} parent=5 // pred_check_branch
        %2113 = sbr.rel (%p2111) target = $region92
      $region91: #{tpu_custom_call.1} parent=5 // pred_region
        %s2114 = ssub.s32 %s22, 2
        // Predicated region
        $region93: #{tpu_custom_call.1} parent=91 // pred_check
          %p2115 = pneg %p230
        $region94: #{tpu_custom_call.1} parent=91 // pred_check_branch
          %2117 = sbr.rel (%p2115) target = $region96
        $region95: #{tpu_custom_call.1} parent=91 // pred_region
          %s2118 = sand.u32 %s215, 1
          %s2119 = scalar_lea.sflag [#allocation5], %s2118
          %s2120 = sand.u32 %s215, 1
          %s2121 = smul.addr %s2120, 8
          %s2122 = scalar_lea.vmem [#allocation15], %s2121
          %2123 = dma.done %s2119, 128
        $region96: #{tpu_custom_call.1} parent=91 // pred_fallthru
          _
      $region92: #{tpu_custom_call.1} parent=5 // pred_fallthru
        _
    $region6: #{tpu_custom_call.1} parent=1 // loop_footer
      %s26 = sadd.s32 1, %s22
    $region7: #{tpu_custom_call.1} parent=1 // loop_footer_branch
      %21 = sbr.rel target = $region3
    $region8: #{tpu_custom_call.1} parent=1 // loop_exit
      _
    %2124 = vsyncpa [#allocation4], 1
    %s2125 = scalar_lea.sflag [#allocation4], 1
    %2126 = vsyncpa %s2125, 1
    %2127 = vsyncpa [#allocation7], 1
    %2128 = vsyncpa [#allocation10], 1
    %2129 = vsyncpa [#allocation13], 1
    %2130 = vsyncpa [#allocation5], 1
    %s2131 = scalar_lea.sflag [#allocation5], 1
    %2132 = vsyncpa %s2131, 1

</llo_original>
